<compile_context>
chip_gen: v7x
topology: tpu7x:2x2x1
jax: 0.10.0
libtpu: 0.0.40
codegen_flags: <defaults>
</compile_context>

<pallas_src>
import functools

import jax
import jax.numpy as jnp
from jax import lax
from jax.experimental import pallas as pl
from jax.experimental.pallas import tpu as pltpu

_LANE = 128


def _round_up(x, m):
    return (x + m - 1) // m * m


def _pad_axis(a, axis, size):
    if a.shape[axis] == size:
        return a
    pad = [(0, 0)] * a.ndim
    pad[axis] = (0, size - a.shape[axis])
    return jnp.pad(a, pad)


def _decimate(a, axis, n_out, stride, offset):
    """a[..., offset : offset + n_out*stride : stride, ...] along `axis`.

    Built only from unit-stride slices + reshape + index so it always lowers
    on Mosaic (no strided vector slices needed for the stride=2 blocks).
    """
    length = (n_out - 1) * stride + 1
    a = lax.slice_in_dim(a, offset, offset + length, axis=axis)
    if stride == 1:
        return a
    pad = n_out * stride - length                       # == stride - 1
    pad_shape = list(a.shape)
    pad_shape[axis] = pad
    a = jnp.concatenate([a, jnp.zeros(pad_shape, a.dtype)], axis=axis)
    new_shape = a.shape[:axis] + (n_out, stride) + a.shape[axis + 1:]
    return lax.index_in_dim(a.reshape(new_shape), 0, axis=axis + 1, keepdims=False)


def _preact_bottleneck_kernel(
    x_ref,            # (RS, W, Cin_p)   bf16  main rows of this band
    halo_ref,         # (2,  W, Cin_p)   bf16  [row above band, row below band]
    s1_ref, b1_ref,   # (1, Cin_p)       f32   folded bn1 scale / shift
    w1_ref,           # (Cin_p, P_p)     bf16  conv1 1x1
    s2_ref, b2_ref,   # (1, P_p)         f32   folded bn2
    w2_ref,           # (9*P_p, P_p)     bf16  conv2 3x3, row-major (dy, dx, cin)
    s3_ref, b3_ref,   # (1, P_p)         f32   folded bn3
    w3_ref,           # (P_p, Cout_p)    bf16  conv3 1x1
    *rest,            # [ws_ref (Cin_p, Cout_p) bf16], out_ref (TH, Wo, Cout_p) bf16
    stride, true_h, has_shortcut,
):
    if has_shortcut:
        ws_ref, out_ref = rest
    else:
        (out_ref,) = rest

    f32, bf16 = jnp.float32, jnp.bfloat16
    RS, W, Cin = x_ref.shape
    P = w1_ref.shape[1]
    TH, Wo, Cout = out_ref.shape
    rows = RS + 2
    r = pl.program_id(1)

    # ---- assemble the (RS+2)-row band: [top halo, main rows, bottom halo] ----
    xband = jnp.concatenate([halo_ref[0:1], x_ref[...], halo_ref[1:2]], axis=0)

    # ---- relu(bn1): f32 VPU math (v5e-safe), one cast for the MXU ----
    h = jnp.maximum(xband.astype(f32) * s1_ref[0] + b1_ref[0], 0.0).astype(bf16)

    # ---- conv1 (1x1): channel matmul on the MXU (bf16 in, f32 accumulate) ----
    h1 = jnp.dot(h.reshape(rows * W, Cin), w1_ref[...],
                 preferred_element_type=f32)

    # ---- relu(bn2) -> bf16, then clear rows that are conv2's zero padding ----
    # (conv2 pads the *intermediate*, not x, so band rows that came from x's
    #  zero-padded/overshoot rows must be forced to exactly zero here).
    h2 = jnp.maximum(h1 * s2_ref[0] + b2_ref[0], 0.0).astype(bf16)
    h2 = h2.reshape(rows, W, P)
    grow = r * RS - 1 + lax.broadcasted_iota(jnp.int32, (rows, 1, 1), 0)
    h2 = jnp.where((grow >= 0) & (grow < true_h), h2, jnp.zeros_like(h2))

    # ---- conv2 (3x3, pad=1, stride): 3 accumulated dots, K = 3*P each ----
    # Taps are gathered straight from the bf16 band (no 9P f32 im2col); the
    # per-dy lane-dim concat of three 128-aligned windows is layout-cheap.
    zc = jnp.zeros((rows, 1, P), bf16)
    h2p = jnp.concatenate([zc, h2, zc], axis=1)          # (rows, W+2, P)
    acc = jnp.zeros((TH * Wo, P), f32)
    for dy in range(3):
        rband = _decimate(h2p, 0, TH, stride, dy)        # (TH, W+2, P)
        taps = [_decimate(rband, 1, Wo, stride, dx) for dx in range(3)]
        blk = jnp.concatenate(taps, axis=-1).reshape(TH * Wo, 3 * P)
        acc = acc + jnp.dot(blk, w2_ref[dy * 3 * P:(dy + 1) * 3 * P, :],
                            preferred_element_type=f32)

    # ---- relu(bn3) + conv3 (1x1) ----
    h4 = jnp.maximum(acc * s3_ref[0] + b3_ref[0], 0.0).astype(bf16)
    out = jnp.dot(h4, w3_ref[...], preferred_element_type=f32)   # (TH*Wo, Cout)

    # ---- shortcut (computed last; padded lanes of x / weights are zero) ----
    if has_shortcut:
        hs = _decimate(_decimate(h, 0, TH, stride, 1), 1, Wo, stride, 0)
        out = out + jnp.dot(hs.reshape(TH * Wo, Cin), ws_ref[...],
                            preferred_element_type=f32)
    else:
        out = out + x_ref[...].astype(f32).reshape(TH * Wo, Cout)

    out_ref[...] = out.reshape(TH, Wo, Cout).astype(out_ref.dtype)


def _pick_band_rows(Ho, requested, band_bytes_fn, budget=4 << 20):
    divisors = [d for d in range(1, Ho + 1) if Ho % d == 0]
    if requested is not None:
        return max(d for d in divisors if d <= max(int(requested), 1))
    for d in reversed(divisors):
        if band_bytes_fn(d) <= budget:
            return d
    return 1


def preact_bottleneck_nhwc(x_nhwc, params, *, stride=1, block_rows=None):
    """Forward pass, NHWC in / NHWC out (preferred kernel boundary). bf16 output."""
    f32, bf16 = jnp.float32, jnp.bfloat16
    N, H, W, Cin = x_nhwc.shape
    P = params["w1"].shape[1]
    Cout = params["w3"].shape[1]
    Ho = (H - 1) // stride + 1
    Wo = (W - 1) // stride + 1
    has_shortcut = (stride != 1) or (Cin != Cout)

    # Channel (lane) dims padded to multiples of 128 -> MXU-shaped matmuls and
    # lane-dense, unmasked output stores.  (For a full network keep channels
    # 128-aligned end-to-end so these pads/slices are no-ops.)
    Cin_p = _round_up(Cin, _LANE)
    P_p = _round_up(P, _LANE)
    Cout_p = _round_up(Cout, _LANE)

    def band_bytes(th):
        rs = th * stride
        rw = rs + 2
        return int(
            rw * W * Cin_p * 4                       # x band + h (both bf16)
            + rw * W * P_p * 4                       # conv1 out (f32)
            + rw * (W + 2) * P_p * 4                 # h2 + column-padded copy (bf16)
            + th * Wo * 3 * P_p * 2                  # per-dy tap block (bf16)
            + th * Wo * P_p * 10                     # conv2 acc (f32) + bn3 out (f32+bf16)
            + th * Wo * Cout_p * 10                  # conv3 (f32) + shortcut (f32) + out (bf16)
            + th * Wo * Cin_p * 2                    # shortcut activations (bf16)
        )

    TH = _pick_band_rows(Ho, block_rows, band_bytes)     # output rows per band
    n_bands = Ho // TH
    RS = TH * stride                                     # input rows owned per band
    H_pad = n_bands * RS                                 # >= H (odd H, stride 2)

    # ---- operand prep: bf16 activations / weights, f32 folded BN ----
    x = _pad_axis(x_nhwc, 3, Cin_p).astype(bf16)
    x = _pad_axis(x, 1, H_pad)
    # Per-band halo rows (row above / row below each band); zeros at the image
    # top/bottom.  A tiny side array (2 rows per band) so the main input blocks
    # stay non-overlapping and fully auto-pipelined.
    xp = jnp.pad(x, ((0, 0), (1, 1), (0, 0), (0, 0)))
    top = xp[:, 0:H_pad:RS]
    bot = xp[:, RS + 1:H_pad + 2:RS]
    halo = jnp.stack([top, bot], axis=2)                 # (N, n_bands, 2, W, Cin_p)

    s1 = _pad_axis(params["s1"].astype(f32), 1, Cin_p)
    b1 = _pad_axis(params["b1"].astype(f32), 1, Cin_p)
    s2 = _pad_axis(params["s2"].astype(f32), 1, P_p)
    b2 = _pad_axis(params["b2"].astype(f32), 1, P_p)
    s3 = _pad_axis(params["s3"].astype(f32), 1, P_p)
    b3 = _pad_axis(params["b3"].astype(f32), 1, P_p)

    w1 = _pad_axis(_pad_axis(params["w1"], 0, Cin_p), 1, P_p).astype(bf16)
    w2 = _pad_axis(_pad_axis(params["w2"], 2, P_p), 3, P_p)        # (3,3,P_p,P_p) HWIO
    w2r = w2.reshape(9 * P_p, P_p).astype(bf16)                    # row-major tap weight
    w3 = _pad_axis(_pad_axis(params["w3"], 0, P_p), 1, Cout_p).astype(bf16)

    resident = [s1, b1, w1, s2, b2, w2r, s3, b3, w3]
    if has_shortcut:
        resident.append(
            _pad_axis(_pad_axis(params["ws"], 0, Cin_p), 1, Cout_p).astype(bf16))
    # else: the shortcut weight is never passed / DMA'd at all.

    _const2 = lambda b, r: (0, 0)
    in_specs = [
        pl.BlockSpec((None, RS, W, Cin_p), lambda b, r: (b, r, 0, 0)),
        pl.BlockSpec((None, None, 2, W, Cin_p), lambda b, r: (b, r, 0, 0, 0)),
    ] + [pl.BlockSpec(a.shape, _const2) for a in resident]

    # VMEM budget: double-buffered I/O bands, two pipeline buffers per resident
    # operand, plus the in-kernel temporaries, with a 1.25x margin.
    weight_bytes = sum(int(a.size) * a.dtype.itemsize for a in resident)
    io_bytes = 2 * (RS * W * Cin_p * 2 + 2 * W * Cin_p * 2 + TH * Wo * Cout_p * 2)
    vmem_limit = int(1.25 * (io_bytes + 2 * weight_bytes + band_bytes(TH)))
    vmem_limit = min(max(vmem_limit, 16 << 20), 56 << 20)

    out = pl.pallas_call(
        functools.partial(_preact_bottleneck_kernel, stride=stride, true_h=H,
                          has_shortcut=has_shortcut),
        out_shape=jax.ShapeDtypeStruct((N, Ho, Wo, Cout_p), bf16),
        grid_spec=pltpu.PrefetchScalarGridSpec(
            num_scalar_prefetch=0,
            grid=(N, n_bands),
            in_specs=in_specs,
            out_specs=pl.BlockSpec((None, TH, Wo, Cout_p), lambda b, r: (b, r, 0, 0)),
        ),
        compiler_params=pltpu.CompilerParams(
            dimension_semantics=("parallel", "parallel"),   # independent steps
            vmem_limit_bytes=vmem_limit,
        ),
    )(x, halo, *resident)

    return out[..., :Cout] if Cout_p != Cout else out


def preact_bottleneck(x_nchw, params, *, stride=1, block_rows=None):
    """PyTorch-layout (NCHW) convenience wrapper; prefer the NHWC entry point."""
    x = jnp.transpose(x_nchw, (0, 2, 3, 1))
    out = preact_bottleneck_nhwc(x, params, stride=stride, block_rows=block_rows)
    return jnp.transpose(out, (0, 3, 1, 2))


# ------------------------- parameter construction -------------------------

def make_params(key, in_planes, planes, expansion=4, eps=1e-5):
    """Deterministic synthetic parameters (inference-mode BN folded to scale/shift)."""
    ks = jax.random.split(key, 8)
    f32 = jnp.float32

    def bn_fold(c, k):
        gamma = 0.5 + 0.5 * jax.random.uniform(k, (c,), f32)
        beta = 0.1 * jnp.arange(c, dtype=f32) / c
        mean = 0.05 * jnp.arange(c, dtype=f32) / c
        var = 0.5 + 0.5 * jax.random.uniform(jax.random.fold_in(k, 1), (c,), f32)
        scale = gamma / jnp.sqrt(var + eps)
        shift = beta - mean * scale
        return scale.reshape(1, c), shift.reshape(1, c)

    s1, b1 = bn_fold(in_planes, ks[0])
    s2, b2 = bn_fold(planes, ks[1])
    s3, b3 = bn_fold(planes, ks[2])

    w1 = 0.1 * jax.random.normal(ks[3], (in_planes, planes), f32)            # 1x1
    w2 = 0.1 * jax.random.normal(ks[4], (3, 3, planes, planes), f32)         # 3x3 HWIO
    w3 = 0.1 * jax.random.normal(ks[5], (planes, expansion * planes), f32)   # 1x1
    ws = 0.1 * jax.random.normal(ks[6], (in_planes, expansion * planes), f32)

    return dict(s1=s1, b1=b1, s2=s2, b2=b2, s3=s3, b3=b3,
                w1=w1, w2=w2, w3=w3, ws=ws)


# ------------------------- pure-JAX reference -------------------------

def reference_forward(x_nchw, p, *, stride=1):
    hp = jax.lax.Precision.HIGHEST
    x = jnp.transpose(x_nchw, (0, 2, 3, 1)).astype(jnp.float32)
    Cin = x.shape[-1]
    Cout = p["w3"].shape[1]

    def conv(x, w_hwio, s, pad):
        return jax.lax.conv_general_dilated(
            x, w_hwio, (s, s), [(pad, pad), (pad, pad)],
            dimension_numbers=("NHWC", "HWIO", "NHWC"), precision=hp)

    def bnrelu(x, scale, shift):
        return jnp.maximum(x * scale.reshape(1, 1, 1, -1) + shift.reshape(1, 1, 1, -1), 0.0)

    h = bnrelu(x, p["s1"], p["b1"])
    if stride != 1 or Cin != Cout:
        sc = conv(h, p["ws"].reshape(1, 1, *p["ws"].shape), stride, 0)
    else:
        sc = x
    o = conv(h, p["w1"].reshape(1, 1, *p["w1"].shape), 1, 0)
    o = conv(bnrelu(o, p["s2"], p["b2"]), p["w2"], stride, 1)
    o = conv(bnrelu(o, p["s3"], p["b3"]), p["w3"].reshape(1, 1, *p["w3"].shape), 1, 0)
    o = o + sc
    return jnp.transpose(o, (0, 3, 1, 2))


if __name__ == "__main__":
    key = jax.random.PRNGKey(0)
    k_x1, k_p1, k_x2, k_p2, k_x3, k_p3 = jax.random.split(key, 6)
    f32, bf16 = jnp.float32, jnp.bfloat16

    # bf16 activation I/O + bf16 MXU operands vs a Precision.HIGHEST f32
    # reference -> modestly relaxed tolerance.
    TOL = 5e-2

    def check(x, p, stride, block_rows, want_shape):
        xq = x.astype(bf16).astype(f32)   # kernel boundary is bf16: quantize ref input identically
        out = jax.block_until_ready(
            preact_bottleneck(x, p, stride=stride, block_rows=block_rows))
        ref = jax.block_until_ready(reference_forward(xq, p, stride=stride))
        assert out.shape == want_shape, (out.shape, want_shape)
        err = float(jnp.max(jnp.abs(out.astype(f32) - ref)))
        assert jnp.allclose(out.astype(f32), ref, rtol=TOL, atol=TOL), err

    N, Cin, H, W = 2, 16, 8, 8
    planes = 8

    # Case 1: projection shortcut (Cin != 4*planes), stride 1, two row-bands.
    x1 = jax.random.normal(k_x1, (N, Cin, H, W), f32)
    p1 = make_params(k_p1, Cin, planes)
    check(x1, p1, stride=1, block_rows=4, want_shape=(N, 4 * planes, H, W))

    # Case 2: identity shortcut (Cin == 4*planes, stride 1), four row-bands.
    Cin2 = 32
    x2 = jax.random.normal(k_x2, (N, Cin2, H, W), f32)
    p2 = make_params(k_p2, Cin2, planes)
    check(x2, p2, stride=1, block_rows=2, want_shape=(N, 4 * planes, H, W))

    # Case 3: projection shortcut with stride 2 (downsampling), two row-bands.
    x3 = jax.random.normal(k_x3, (N, Cin, H, W), f32)
    p3 = make_params(k_p3, Cin, planes)
    check(x3, p3, stride=2, block_rows=2, want_shape=(N, 4 * planes, H // 2, W // 2))

    print("KERNEL_OK")
</pallas_src>

<mosaic_0001>
module attributes {stable_mosaic.version = 11 : i64} {
  func.func @_preact_bottleneck_kernel(%arg0: i32, %arg1: i32, %arg2: memref<1x4x8x128xbf16, #tpu.memory_space<vmem>>, %arg3: memref<1x1x2x8x128xbf16, #tpu.memory_space<vmem>>, %arg4: memref<1x128xf32, #tpu.memory_space<vmem>>, %arg5: memref<1x128xf32, #tpu.memory_space<vmem>>, %arg6: memref<128x128xbf16, #tpu.memory_space<vmem>>, %arg7: memref<1x128xf32, #tpu.memory_space<vmem>>, %arg8: memref<1x128xf32, #tpu.memory_space<vmem>>, %arg9: memref<1152x128xbf16, #tpu.memory_space<vmem>>, %arg10: memref<1x128xf32, #tpu.memory_space<vmem>>, %arg11: memref<1x128xf32, #tpu.memory_space<vmem>>, %arg12: memref<128x128xbf16, #tpu.memory_space<vmem>>, %arg13: memref<128x128xbf16, #tpu.memory_space<vmem>>, %arg14: memref<1x4x8x128xbf16, #tpu.memory_space<vmem>>) attributes {dimension_semantics = [#tpu.dimension_semantics<parallel>, #tpu.dimension_semantics<parallel>], iteration_bounds = array<i64: 2, 2>, scalar_prefetch = 0 : i64, scratch_operands = 0 : i64, tpu.core_type = #tpu.core_type<tc>, window_params = [{transform_indices = @transform_0, window_bounds = array<i64: 1, 4, 8, 128>}, {transform_indices = @transform_1, window_bounds = array<i64: 1, 1, 2, 8, 128>}, {pipeline_mode = #tpu.pipeline_mode<synchronous>, transform_indices = @transform_2, window_bounds = array<i64: 1, 128>}, {pipeline_mode = #tpu.pipeline_mode<synchronous>, transform_indices = @transform_3, window_bounds = array<i64: 1, 128>}, {pipeline_mode = #tpu.pipeline_mode<synchronous>, transform_indices = @transform_4, window_bounds = array<i64: 128, 128>}, {pipeline_mode = #tpu.pipeline_mode<synchronous>, transform_indices = @transform_5, window_bounds = array<i64: 1, 128>}, {pipeline_mode = #tpu.pipeline_mode<synchronous>, transform_indices = @transform_6, window_bounds = array<i64: 1, 128>}, {pipeline_mode = #tpu.pipeline_mode<synchronous>, transform_indices = @transform_7, window_bounds = array<i64: 1152, 128>}, {pipeline_mode = #tpu.pipeline_mode<synchronous>, transform_indices = @transform_8, window_bounds = array<i64: 1, 128>}, {pipeline_mode = #tpu.pipeline_mode<synchronous>, transform_indices = @transform_9, window_bounds = array<i64: 1, 128>}, {pipeline_mode = #tpu.pipeline_mode<synchronous>, transform_indices = @transform_10, window_bounds = array<i64: 128, 128>}, {pipeline_mode = #tpu.pipeline_mode<synchronous>, transform_indices = @transform_11, window_bounds = array<i64: 128, 128>}, {transform_indices = @transform_12, window_bounds = array<i64: 1, 4, 8, 128>}]} {
    %c0 = arith.constant 0 : index
    %c0_0 = arith.constant 0 : index
    %c0_1 = arith.constant 0 : index
    %c0_2 = arith.constant 0 : index
    %c0_3 = arith.constant 0 : index
    %0 = vector.load %arg3[%c0, %c0_0, %c0_1, %c0_2, %c0_3] : memref<1x1x2x8x128xbf16, #tpu.memory_space<vmem>>, vector<1x1x1x8x128xbf16>
    %1 = vector.shape_cast %0 : vector<1x1x1x8x128xbf16> to vector<1x8x128xbf16>
    %c0_4 = arith.constant 0 : index
    %c0_5 = arith.constant 0 : index
    %c0_6 = arith.constant 0 : index
    %c0_7 = arith.constant 0 : index
    %2 = vector.load %arg2[%c0_4, %c0_5, %c0_6, %c0_7] : memref<1x4x8x128xbf16, #tpu.memory_space<vmem>>, vector<1x4x8x128xbf16>
    %3 = vector.shape_cast %2 : vector<1x4x8x128xbf16> to vector<4x8x128xbf16>
    %c0_8 = arith.constant 0 : index
    %c0_9 = arith.constant 0 : index
    %c1 = arith.constant 1 : index
    %c0_10 = arith.constant 0 : index
    %c0_11 = arith.constant 0 : index
    %4 = vector.load %arg3[%c0_8, %c0_9, %c1, %c0_10, %c0_11] : memref<1x1x2x8x128xbf16, #tpu.memory_space<vmem>>, vector<1x1x1x8x128xbf16>
    %5 = vector.shape_cast %4 : vector<1x1x1x8x128xbf16> to vector<1x8x128xbf16>
    %6 = tpu.concatenate %1, %3, %5 in 0 : vector<1x8x128xbf16>, vector<4x8x128xbf16>, vector<1x8x128xbf16> -> vector<6x8x128xbf16>
    %7 = arith.extf %6 : vector<6x8x128xbf16> to vector<6x8x128xf32>
    %c0_12 = arith.constant 0 : index
    %c0_13 = arith.constant 0 : index
    %8 = vector.load %arg4[%c0_12, %c0_13] : memref<1x128xf32, #tpu.memory_space<vmem>>, vector<1x128xf32>
    %9 = vector.shape_cast %8 : vector<1x128xf32> to vector<128xf32>
    %10 = vector.shape_cast %9 : vector<128xf32> to vector<1x1x128xf32>
    %11 = vector.broadcast %10 : vector<1x1x128xf32> to vector<6x8x128xf32>
    %12 = arith.mulf %7, %11 : vector<6x8x128xf32>
    %c0_14 = arith.constant 0 : index
    %c0_15 = arith.constant 0 : index
    %13 = vector.load %arg5[%c0_14, %c0_15] : memref<1x128xf32, #tpu.memory_space<vmem>>, vector<1x128xf32>
    %14 = vector.shape_cast %13 : vector<1x128xf32> to vector<128xf32>
    %15 = vector.shape_cast %14 : vector<128xf32> to vector<1x1x128xf32>
    %16 = vector.broadcast %15 : vector<1x1x128xf32> to vector<6x8x128xf32>
    %17 = arith.addf %12, %16 : vector<6x8x128xf32>
    %cst = arith.constant 0.000000e+00 : f32
    %18 = vector.broadcast %cst : f32 to vector<6x8x128xf32>
    %19 = arith.maximumf %17, %18 : vector<6x8x128xf32>
    %20 = arith.truncf %19 : vector<6x8x128xf32> to vector<6x8x128xbf16>
    %21 = vector.shape_cast %20 : vector<6x8x128xbf16> to vector<48x128xbf16>
    %c0_16 = arith.constant 0 : index
    %c0_17 = arith.constant 0 : index
    %22 = vector.load %arg6[%c0_16, %c0_17] : memref<128x128xbf16, #tpu.memory_space<vmem>>, vector<128x128xbf16>
    %cst_18 = arith.constant dense<0.000000e+00> : vector<48x128xf32>
    %23 = tpu.matmul %21, %22, %cst_18 {dimension_numbers = #tpu.dot_dimension_numbers<[1], [0], [0], [1], [0, 0, 1, 1], [], []>} : vector<48x128xbf16>, vector<128x128xbf16>, vector<48x128xf32> -> vector<48x128xf32>
    %c0_19 = arith.constant 0 : index
    %c0_20 = arith.constant 0 : index
    %24 = vector.load %arg7[%c0_19, %c0_20] : memref<1x128xf32, #tpu.memory_space<vmem>>, vector<1x128xf32>
    %25 = vector.shape_cast %24 : vector<1x128xf32> to vector<128xf32>
    %26 = vector.shape_cast %25 : vector<128xf32> to vector<1x128xf32>
    %27 = vector.broadcast %26 : vector<1x128xf32> to vector<48x128xf32>
    %28 = arith.mulf %23, %27 : vector<48x128xf32>
    %c0_21 = arith.constant 0 : index
    %c0_22 = arith.constant 0 : index
    %29 = vector.load %arg8[%c0_21, %c0_22] : memref<1x128xf32, #tpu.memory_space<vmem>>, vector<1x128xf32>
    %30 = vector.shape_cast %29 : vector<1x128xf32> to vector<128xf32>
    %31 = vector.shape_cast %30 : vector<128xf32> to vector<1x128xf32>
    %32 = vector.broadcast %31 : vector<1x128xf32> to vector<48x128xf32>
    %33 = arith.addf %28, %32 : vector<48x128xf32>
    %cst_23 = arith.constant 0.000000e+00 : f32
    %34 = vector.broadcast %cst_23 : f32 to vector<48x128xf32>
    %35 = arith.maximumf %33, %34 : vector<48x128xf32>
    %36 = arith.truncf %35 : vector<48x128xf32> to vector<48x128xbf16>
    %37 = vector.shape_cast %36 : vector<48x128xbf16> to vector<6x8x128xbf16>
    %c4_i32 = arith.constant 4 : i32
    %38 = arith.muli %arg1, %c4_i32 : i32
    %c1_i32 = arith.constant 1 : i32
    %39 = arith.subi %38, %c1_i32 : i32
    %40 = tpu.iota {dimensions = array<i32: 0>} : vector<6x1x1xi32>
    %41 = vector.broadcast %39 : i32 to vector<6x1x1xi32>
    %42 = arith.addi %41, %40 : vector<6x1x1xi32>
    %c0_i32 = arith.constant 0 : i32
    %43 = vector.broadcast %c0_i32 : i32 to vector<6x1x1xi32>
    %44 = arith.cmpi sge, %42, %43 : vector<6x1x1xi32>
    %c8_i32 = arith.constant 8 : i32
    %45 = vector.broadcast %c8_i32 : i32 to vector<6x1x1xi32>
    %46 = arith.cmpi slt, %42, %45 : vector<6x1x1xi32>
    %47 = arith.andi %44, %46 : vector<6x1x1xi1>
    %cst_24 = arith.constant 0.000000e+00 : bf16
    %48 = vector.broadcast %cst_24 : bf16 to vector<6x8x128xbf16>
    %49 = vector.shape_cast %47 : vector<6x1x1xi1> to vector<6x1x1xi1>
    %50 = vector.broadcast %49 : vector<6x1x1xi1> to vector<6x8x128xi1>
    %51 = arith.select %50, %37, %48 : vector<6x8x128xi1>, vector<6x8x128xbf16>
    %cst_25 = arith.constant 0.000000e+00 : bf16
    %52 = vector.broadcast %cst_25 : bf16 to vector<6x1x128xbf16>
    %53 = tpu.concatenate %52, %51, %52 in 1 : vector<6x1x128xbf16>, vector<6x8x128xbf16>, vector<6x1x128xbf16> -> vector<6x10x128xbf16>
    %cst_26 = arith.constant 0.000000e+00 : f32
    %54 = vector.broadcast %cst_26 : f32 to vector<32x128xf32>
    %55 = vector.extract_strided_slice %53 {offsets = [0, 0, 0], sizes = [4, 10, 128], strides = [1, 1, 1]} : vector<6x10x128xbf16> to vector<4x10x128xbf16>
    %56 = vector.extract_strided_slice %55 {offsets = [0, 0, 0], sizes = [4, 8, 128], strides = [1, 1, 1]} : vector<4x10x128xbf16> to vector<4x8x128xbf16>
    %57 = vector.extract_strided_slice %55 {offsets = [0, 1, 0], sizes = [4, 8, 128], strides = [1, 1, 1]} : vector<4x10x128xbf16> to vector<4x8x128xbf16>
    %58 = vector.extract_strided_slice %55 {offsets = [0, 2, 0], sizes = [4, 8, 128], strides = [1, 1, 1]} : vector<4x10x128xbf16> to vector<4x8x128xbf16>
    %59 = tpu.concatenate %56, %57, %58 in 2 : vector<4x8x128xbf16>, vector<4x8x128xbf16>, vector<4x8x128xbf16> -> vector<4x8x384xbf16>
    %60 = vector.shape_cast %59 : vector<4x8x384xbf16> to vector<32x384xbf16>
    %c0_27 = arith.constant 0 : index
    %c0_28 = arith.constant 0 : index
    %61 = vector.load %arg9[%c0_27, %c0_28] : memref<1152x128xbf16, #tpu.memory_space<vmem>>, vector<384x128xbf16>
    %cst_29 = arith.constant dense<0.000000e+00> : vector<32x128xf32>
    %62 = tpu.matmul %60, %61, %cst_29 {dimension_numbers = #tpu.dot_dimension_numbers<[1], [0], [0], [1], [0, 0, 1, 1], [], []>} : vector<32x384xbf16>, vector<384x128xbf16>, vector<32x128xf32> -> vector<32x128xf32>
    %63 = arith.addf %54, %62 : vector<32x128xf32>
    %64 = vector.extract_strided_slice %53 {offsets = [1, 0, 0], sizes = [4, 10, 128], strides = [1, 1, 1]} : vector<6x10x128xbf16> to vector<4x10x128xbf16>
    %65 = vector.extract_strided_slice %64 {offsets = [0, 0, 0], sizes = [4, 8, 128], strides = [1, 1, 1]} : vector<4x10x128xbf16> to vector<4x8x128xbf16>
    %66 = vector.extract_strided_slice %64 {offsets = [0, 1, 0], sizes = [4, 8, 128], strides = [1, 1, 1]} : vector<4x10x128xbf16> to vector<4x8x128xbf16>
    %67 = vector.extract_strided_slice %64 {offsets = [0, 2, 0], sizes = [4, 8, 128], strides = [1, 1, 1]} : vector<4x10x128xbf16> to vector<4x8x128xbf16>
    %68 = tpu.concatenate %65, %66, %67 in 2 : vector<4x8x128xbf16>, vector<4x8x128xbf16>, vector<4x8x128xbf16> -> vector<4x8x384xbf16>
    %69 = vector.shape_cast %68 : vector<4x8x384xbf16> to vector<32x384xbf16>
    %c384 = arith.constant 384 : index
    %c0_30 = arith.constant 0 : index
    %70 = vector.load %arg9[%c384, %c0_30] : memref<1152x128xbf16, #tpu.memory_space<vmem>>, vector<384x128xbf16>
    %cst_31 = arith.constant dense<0.000000e+00> : vector<32x128xf32>
    %71 = tpu.matmul %69, %70, %cst_31 {dimension_numbers = #tpu.dot_dimension_numbers<[1], [0], [0], [1], [0, 0, 1, 1], [], []>} : vector<32x384xbf16>, vector<384x128xbf16>, vector<32x128xf32> -> vector<32x128xf32>
    %72 = arith.addf %63, %71 : vector<32x128xf32>
    %73 = vector.extract_strided_slice %53 {offsets = [2, 0, 0], sizes = [4, 10, 128], strides = [1, 1, 1]} : vector<6x10x128xbf16> to vector<4x10x128xbf16>
    %74 = vector.extract_strided_slice %73 {offsets = [0, 0, 0], sizes = [4, 8, 128], strides = [1, 1, 1]} : vector<4x10x128xbf16> to vector<4x8x128xbf16>
    %75 = vector.extract_strided_slice %73 {offsets = [0, 1, 0], sizes = [4, 8, 128], strides = [1, 1, 1]} : vector<4x10x128xbf16> to vector<4x8x128xbf16>
    %76 = vector.extract_strided_slice %73 {offsets = [0, 2, 0], sizes = [4, 8, 128], strides = [1, 1, 1]} : vector<4x10x128xbf16> to vector<4x8x128xbf16>
    %77 = tpu.concatenate %74, %75, %76 in 2 : vector<4x8x128xbf16>, vector<4x8x128xbf16>, vector<4x8x128xbf16> -> vector<4x8x384xbf16>
    %78 = vector.shape_cast %77 : vector<4x8x384xbf16> to vector<32x384xbf16>
    %c768 = arith.constant 768 : index
    %c0_32 = arith.constant 0 : index
    %79 = vector.load %arg9[%c768, %c0_32] : memref<1152x128xbf16, #tpu.memory_space<vmem>>, vector<384x128xbf16>
    %cst_33 = arith.constant dense<0.000000e+00> : vector<32x128xf32>
    %80 = tpu.matmul %78, %79, %cst_33 {dimension_numbers = #tpu.dot_dimension_numbers<[1], [0], [0], [1], [0, 0, 1, 1], [], []>} : vector<32x384xbf16>, vector<384x128xbf16>, vector<32x128xf32> -> vector<32x128xf32>
    %81 = arith.addf %72, %80 : vector<32x128xf32>
    %c0_34 = arith.constant 0 : index
    %c0_35 = arith.constant 0 : index
    %82 = vector.load %arg10[%c0_34, %c0_35] : memref<1x128xf32, #tpu.memory_space<vmem>>, vector<1x128xf32>
    %83 = vector.shape_cast %82 : vector<1x128xf32> to vector<128xf32>
    %84 = vector.shape_cast %83 : vector<128xf32> to vector<1x128xf32>
    %85 = vector.broadcast %84 : vector<1x128xf32> to vector<32x128xf32>
    %86 = arith.mulf %81, %85 : vector<32x128xf32>
    %c0_36 = arith.constant 0 : index
    %c0_37 = arith.constant 0 : index
    %87 = vector.load %arg11[%c0_36, %c0_37] : memref<1x128xf32, #tpu.memory_space<vmem>>, vector<1x128xf32>
    %88 = vector.shape_cast %87 : vector<1x128xf32> to vector<128xf32>
    %89 = vector.shape_cast %88 : vector<128xf32> to vector<1x128xf32>
    %90 = vector.broadcast %89 : vector<1x128xf32> to vector<32x128xf32>
    %91 = arith.addf %86, %90 : vector<32x128xf32>
    %cst_38 = arith.constant 0.000000e+00 : f32
    %92 = vector.broadcast %cst_38 : f32 to vector<32x128xf32>
    %93 = arith.maximumf %91, %92 : vector<32x128xf32>
    %94 = arith.truncf %93 : vector<32x128xf32> to vector<32x128xbf16>
    %c0_39 = arith.constant 0 : index
    %c0_40 = arith.constant 0 : index
    %95 = vector.load %arg12[%c0_39, %c0_40] : memref<128x128xbf16, #tpu.memory_space<vmem>>, vector<128x128xbf16>
    %cst_41 = arith.constant dense<0.000000e+00> : vector<32x128xf32>
    %96 = tpu.matmul %94, %95, %cst_41 {dimension_numbers = #tpu.dot_dimension_numbers<[1], [0], [0], [1], [0, 0, 1, 1], [], []>} : vector<32x128xbf16>, vector<128x128xbf16>, vector<32x128xf32> -> vector<32x128xf32>
    %97 = vector.extract_strided_slice %20 {offsets = [1, 0, 0], sizes = [4, 8, 128], strides = [1, 1, 1]} : vector<6x8x128xbf16> to vector<4x8x128xbf16>
    %98 = vector.extract_strided_slice %97 {offsets = [0, 0, 0], sizes = [4, 8, 128], strides = [1, 1, 1]} : vector<4x8x128xbf16> to vector<4x8x128xbf16>
    %99 = vector.shape_cast %98 : vector<4x8x128xbf16> to vector<32x128xbf16>
    %c0_42 = arith.constant 0 : index
    %c0_43 = arith.constant 0 : index
    %100 = vector.load %arg13[%c0_42, %c0_43] : memref<128x128xbf16, #tpu.memory_space<vmem>>, vector<128x128xbf16>
    %cst_44 = arith.constant dense<0.000000e+00> : vector<32x128xf32>
    %101 = tpu.matmul %99, %100, %cst_44 {dimension_numbers = #tpu.dot_dimension_numbers<[1], [0], [0], [1], [0, 0, 1, 1], [], []>} : vector<32x128xbf16>, vector<128x128xbf16>, vector<32x128xf32> -> vector<32x128xf32>
    %102 = arith.addf %96, %101 : vector<32x128xf32>
    %103 = vector.shape_cast %102 : vector<32x128xf32> to vector<4x8x128xf32>
    %104 = arith.truncf %103 : vector<4x8x128xf32> to vector<4x8x128xbf16>
    %c0_45 = arith.constant 0 : index
    %c0_46 = arith.constant 0 : index
    %c0_47 = arith.constant 0 : index
    %c0_48 = arith.constant 0 : index
    %105 = vector.load %arg14[%c0_45, %c0_46, %c0_47, %c0_48] : memref<1x4x8x128xbf16, #tpu.memory_space<vmem>>, vector<1x4x8x128xbf16>
    %106 = vector.shape_cast %105 : vector<1x4x8x128xbf16> to vector<4x8x128xbf16>
    %107 = vector.shape_cast %104 : vector<4x8x128xbf16> to vector<1x4x8x128xbf16>
    tpu.vector_store %arg14[%c0_45, %c0_46, %c0_47, %c0_48], %107 {strides = array<i32>} : memref<1x4x8x128xbf16, #tpu.memory_space<vmem>>, vector<1x4x8x128xbf16>,
    return
  }
  func.func @transform_0(%arg0: i32, %arg1: i32) -> (i32, i32, i32, i32) {
    %c0_i32 = arith.constant 0 : i32
    %c0_i32_0 = arith.constant 0 : i32
    %c0_i32_1 = arith.constant 0 : i32
    return %arg0, %arg1, %c0_i32, %c0_i32_0 : i32, i32, i32, i32
  }
  func.func @transform_1(%arg0: i32, %arg1: i32) -> (i32, i32, i32, i32, i32) {
    %c0_i32 = arith.constant 0 : i32
    %c0_i32_0 = arith.constant 0 : i32
    %c0_i32_1 = arith.constant 0 : i32
    %c0_i32_2 = arith.constant 0 : i32
    return %arg0, %arg1, %c0_i32, %c0_i32_0, %c0_i32_1 : i32, i32, i32, i32, i32
  }
  func.func @transform_2(%arg0: i32, %arg1: i32) -> (i32, i32) {
    %c0_i32 = arith.constant 0 : i32
    %c0_i32_0 = arith.constant 0 : i32
    %c0_i32_1 = arith.constant 0 : i32
    return %c0_i32, %c0_i32_0 : i32, i32
  }
  func.func @transform_3(%arg0: i32, %arg1: i32) -> (i32, i32) {
    %c0_i32 = arith.constant 0 : i32
    %c0_i32_0 = arith.constant 0 : i32
    %c0_i32_1 = arith.constant 0 : i32
    return %c0_i32, %c0_i32_0 : i32, i32
  }
  func.func @transform_4(%arg0: i32, %arg1: i32) -> (i32, i32) {
    %c0_i32 = arith.constant 0 : i32
    %c0_i32_0 = arith.constant 0 : i32
    %c0_i32_1 = arith.constant 0 : i32
    return %c0_i32, %c0_i32_0 : i32, i32
  }
  func.func @transform_5(%arg0: i32, %arg1: i32) -> (i32, i32) {
    %c0_i32 = arith.constant 0 : i32
    %c0_i32_0 = arith.constant 0 : i32
    %c0_i32_1 = arith.constant 0 : i32
    return %c0_i32, %c0_i32_0 : i32, i32
  }
  func.func @transform_6(%arg0: i32, %arg1: i32) -> (i32, i32) {
    %c0_i32 = arith.constant 0 : i32
    %c0_i32_0 = arith.constant 0 : i32
    %c0_i32_1 = arith.constant 0 : i32
    return %c0_i32, %c0_i32_0 : i32, i32
  }
  func.func @transform_7(%arg0: i32, %arg1: i32) -> (i32, i32) {
    %c0_i32 = arith.constant 0 : i32
    %c0_i32_0 = arith.constant 0 : i32
    %c0_i32_1 = arith.constant 0 : i32
    return %c0_i32, %c0_i32_0 : i32, i32
  }
  func.func @transform_8(%arg0: i32, %arg1: i32) -> (i32, i32) {
    %c0_i32 = arith.constant 0 : i32
    %c0_i32_0 = arith.constant 0 : i32
    %c0_i32_1 = arith.constant 0 : i32
    return %c0_i32, %c0_i32_0 : i32, i32
  }
  func.func @transform_9(%arg0: i32, %arg1: i32) -> (i32, i32) {
    %c0_i32 = arith.constant 0 : i32
    %c0_i32_0 = arith.constant 0 : i32
    %c0_i32_1 = arith.constant 0 : i32
    return %c0_i32, %c0_i32_0 : i32, i32
  }
  func.func @transform_10(%arg0: i32, %arg1: i32) -> (i32, i32) {
    %c0_i32 = arith.constant 0 : i32
    %c0_i32_0 = arith.constant 0 : i32
    %c0_i32_1 = arith.constant 0 : i32
    return %c0_i32, %c0_i32_0 : i32, i32
  }
  func.func @transform_11(%arg0: i32, %arg1: i32) -> (i32, i32) {
    %c0_i32 = arith.constant 0 : i32
    %c0_i32_0 = arith.constant 0 : i32
    %c0_i32_1 = arith.constant 0 : i32
    return %c0_i32, %c0_i32_0 : i32, i32
  }
  func.func @transform_12(%arg0: i32, %arg1: i32) -> (i32, i32, i32, i32) {
    %c0_i32 = arith.constant 0 : i32
    %c0_i32_0 = arith.constant 0 : i32
    %c0_i32_1 = arith.constant 0 : i32
    return %arg0, %arg1, %c0_i32, %c0_i32_0 : i32, i32, i32, i32
  }
}

</mosaic_0001>

<llo_original>
// kernel: tpu_custom_call.1
$region0: #{tpu_custom_call.1}
  #allocation0 [shape = 'u32[]', space=smem, size = 0x4, offset = 0x4, fixed_abs, tag = 'smem constant byte address 0x4 - core index']
  #allocation1 [shape = 'u32[144,128]{1,0:T(1,128)}', space=vmem, size = 0x12000, scoped, tag = 'internal scratch']
  %s0 = inlined_call_operand.hbm [shape: bf16[2,8,8,128], index: 0, kind: input, shape index: {}]
  %s1 = inlined_call_operand.hbm [shape: bf16[2,2,2,8,128], index: 1, kind: input, shape index: {}]
  %s2 = inlined_call_operand.vmem [shape: f32[1,128], index: 2, kind: input, shape index: {}]
  %s3 = inlined_call_operand.vmem [shape: f32[1,128], index: 3, kind: input, shape index: {}]
  %s4 = inlined_call_operand.hbm [shape: bf16[128,128], index: 4, kind: input, shape index: {}]
  %s5 = inlined_call_operand.vmem [shape: f32[1,128], index: 5, kind: input, shape index: {}]
  %s6 = inlined_call_operand.vmem [shape: f32[1,128], index: 6, kind: input, shape index: {}]
  %s7 = inlined_call_operand.hbm [shape: bf16[1152,128], index: 7, kind: input, shape index: {}]
  %s8 = inlined_call_operand.vmem [shape: f32[1,128], index: 8, kind: input, shape index: {}]
  %s9 = inlined_call_operand.vmem [shape: f32[1,128], index: 9, kind: input, shape index: {}]
  %s10 = inlined_call_operand.hbm [shape: bf16[128,128], index: 10, kind: input, shape index: {}]
  %s11 = inlined_call_operand.hbm [shape: bf16[128,128], index: 11, kind: input, shape index: {}]
  %s12 = inlined_call_operand.hbm [shape: bf16[2,8,8,128], index: 12, kind: output, shape index: {}]
  %s13 = sld [smem:[#allocation0]]
  $region105: #{tpu_custom_call.1} parent=0
    _
  %s15 = ssub.s32 1, %s13
  %s16 = scalar_select 0, %s15, %s13
  $region1: #{tpu_custom_call.1} parent=0
    #allocation2 [shape = 'u8[16384]{0}', space=vmem, size = 0x4000, scoped, tag = 'input window, operand 0']
    #allocation3 [shape = 's32[2]{0}', space=sflag, size = 0x8, scoped, tag = 'scoped memory for tpu_custom_call.1']
    #allocation4 [shape = 's32[2]{0}', space=sflag, size = 0x8, scoped, tag = 'scoped memory for tpu_custom_call.1']
    #allocation5 [shape = 'u8[8192]{0}', space=vmem, size = 0x2000, scoped, tag = 'input window, operand 1']
    #allocation6 [shape = 's32[2]{0}', space=sflag, size = 0x8, scoped, tag = 'scoped memory for tpu_custom_call.1']
    #allocation7 [shape = 'u8[32768]{0}', space=vmem, size = 0x8000, scoped, tag = 'input window, operand 4, single buffered']
    #allocation8 [shape = 'u8[294912]{0}', space=vmem, size = 0x48000, scoped, tag = 'input window, operand 7, single buffered']
    #allocation9 [shape = 's32[1]{0}', space=sflag, size = 0x4, scoped, tag = 'scoped memory for tpu_custom_call.1']
    #allocation10 [shape = 'u8[32768]{0}', space=vmem, size = 0x8000, scoped, tag = 'input window, operand 10, single buffered']
    #allocation11 [shape = 'u8[32768]{0}', space=vmem, size = 0x8000, scoped, tag = 'input window, operand 11, single buffered']
    #allocation12 [shape = 's32[1]{0}', space=sflag, size = 0x4, scoped, tag = 'scoped memory for tpu_custom_call.1']
    #allocation13 [shape = 'u8[16384]{0}', space=vmem, size = 0x4000, scoped, tag = 'output window, operand 0']
    %17 = vsyncpa [#allocation3], 0
    %s18 = scalar_lea.sflag [#allocation3], 1
    %19 = vsyncpa %s18, 0
    %20 = vsyncpa [#allocation6], 0
    %s21 = scalar_lea.sflag [#allocation6], 1
    %22 = vsyncpa %s21, 0
    %23 = vsyncpa [#allocation9], 0
    %24 = vsyncpa [#allocation12], 0
    %25 = vsyncpa [#allocation4], 0
    %s26 = scalar_lea.sflag [#allocation4], 1
    %27 = vsyncpa %s26, 0
    loop: start=0, step=1, limit=6
    $region2: #{tpu_custom_call.1} parent=1 // loop_pre_header
      _
    $region3: #{tpu_custom_call.1} parent=1 // loop_header
      %s29 = sphi 0, %s33
      %p30 = scmp.ge.s32.totalorder %s29, 6
      %s36 = sphi 0, %s48
      %s37 = sphi 0, %s44
      %s38 = sphi 0, %s36
      %s39 = sphi 0, %s37
      %s40 = sphi 0, %s38
      %s41 = sphi 0, %s39
      %s53 = sphi 0, %s55
      %s56 = sphi 0, %s53
      %s57 = sphi 0, %s56
      %s73 = sphi 0, %s57
      %s81 = sphi 0, %s83
      %s84 = sphi 0, %s81
      %s85 = sphi 0, %s84
      %s101 = sphi 0, %s85
      %s105 = sphi 0, %s105
      %s107 = sphi 0, %s105
      %s108 = sphi 0, %s107
      %s122 = sphi 0, %s108
      %s126 = sphi 0, %s126
      %s128 = sphi 0, %s126
      %s129 = sphi 0, %s128
      %s143 = sphi 0, %s129
      %s147 = sphi 0, %s147
      %s149 = sphi 0, %s147
      %s150 = sphi 0, %s149
      %s164 = sphi 0, %s150
      %s168 = sphi 0, %s168
      %s170 = sphi 0, %s168
      %s171 = sphi 0, %s170
      %s185 = sphi 0, %s171
      %s189 = sphi 0, %s189
      %s191 = sphi 0, %s189
      %s192 = sphi 0, %s191
      %s206 = sphi 0, %s192
      %s210 = sphi 0, %s210
      %s212 = sphi 0, %s210
      %s213 = sphi 0, %s212
      %s227 = sphi 0, %s213
      %s231 = sphi 0, %s231
      %s233 = sphi 0, %s231
      %s234 = sphi 0, %s233
      %s248 = sphi 0, %s234
      %s252 = sphi 0, %s252
      %s254 = sphi 0, %s252
      %s255 = sphi 0, %s254
      %s269 = sphi 0, %s255
      %s273 = sphi 0, %s273
      %s275 = sphi 0, %s273
      %s276 = sphi 0, %s275
      %s290 = sphi 0, %s276
      %s294 = sphi 0, %s294
      %s296 = sphi 0, %s294
      %s297 = sphi 0, %s296
      %s311 = sphi 0, %s297
      %s319 = sphi 0, %s321
      %s322 = sphi 0, %s319
      %s323 = sphi 0, %s322
      %s339 = sphi 0, %s323
    $region4: #{tpu_custom_call.1} parent=1 // loop_header_branch
      %32 = sbr.rel (%p30) target = $region8
    $region5: #{tpu_custom_call.1} parent=1 // loop_body
      %s34 = ssub.s32 %s29, 1
      %s35 = ssub.s32 %s29, 2
      %s42 = sadd.s32 1, %s37
      %p43 = scmp.ge.s32.totalorder %s42, 2
      %s44 = scalar_select %p43, 0, %s42
      %s45 = sadd.s32 1, %s36
      %s46 = scalar_select %p43, %s45, %s36
      %p47 = scmp.ge.s32.totalorder %s46, 2
      %s48 = scalar_select %p47, 0, %s46
      %s49 = ssub.s32 %s36, %s48
      %s50 = ssub.s32 %s37, %s44
      %s51 = sor.u32 %s49, %s50
      %p52 = scmp.eq.s32.totalorder %s51, 0
      %s54 = sadd.s32 %s53, 1
      %s55 = scalar_select %p52, %s53, %s54
      %p58 = pneg %p52
      %p59 = scmp.eq.s32.totalorder %s29, 3
      %p60 = por %p58, %p59
      %p61 = scmp.ne.s32.totalorder %s53, %s56
      %p62 = scmp.eq.s32.totalorder %s29, 0
      %p63 = por %p61, %p62
      %p64 = scmp.ne.s32.totalorder %s53, %s56
      %p65 = scmp.eq.s32.totalorder %s34, 3
      %p66 = por %p64, %p65
      %p67 = scmp.ne.s32.totalorder %s56, %s57
      %p68 = scmp.eq.s32.totalorder %s34, 0
      %p69 = por %p67, %p68
      %p70 = scmp.ne.s32.totalorder %s56, %s57
      %p71 = scmp.eq.s32.totalorder %s35, 3
      %p72 = por %p70, %p71
      %p74 = scmp.ne.s32.totalorder %s57, %s73
      %p75 = scmp.eq.s32.totalorder %s35, 0
      %p76 = por %p74, %p75
      %s77 = ssub.s32 %s36, %s48
      %s78 = ssub.s32 %s37, %s44
      %s79 = sor.u32 %s77, %s78
      %p80 = scmp.eq.s32.totalorder %s79, 0
      %s82 = sadd.s32 %s81, 1
      %s83 = scalar_select %p80, %s81, %s82
      %p86 = pneg %p80
      %p87 = scmp.eq.s32.totalorder %s29, 3
      %p88 = por %p86, %p87
      %p89 = scmp.ne.s32.totalorder %s81, %s84
      %p90 = scmp.eq.s32.totalorder %s29, 0
      %p91 = por %p89, %p90
      %p92 = scmp.ne.s32.totalorder %s81, %s84
      %p93 = scmp.eq.s32.totalorder %s34, 3
      %p94 = por %p92, %p93
      %p95 = scmp.ne.s32.totalorder %s84, %s85
      %p96 = scmp.eq.s32.totalorder %s34, 0
      %p97 = por %p95, %p96
      %p98 = scmp.ne.s32.totalorder %s84, %s85
      %p99 = scmp.eq.s32.totalorder %s35, 3
      %p100 = por %p98, %p99
      %p102 = scmp.ne.s32.totalorder %s85, %s101
      %p103 = scmp.eq.s32.totalorder %s35, 0
      %p104 = por %p102, %p103
      %s106 = sadd.s32 %s105, 1
      %p109 = scmp.eq.s32.totalorder %s29, 3
      %p110 = scmp.ne.s32.totalorder %s105, %s107
      %p111 = scmp.eq.s32.totalorder %s29, 0
      %p112 = por %p110, %p111
      %p113 = scmp.ne.s32.totalorder %s105, %s107
      %p114 = scmp.eq.s32.totalorder %s34, 3
      %p115 = por %p113, %p114
      %p116 = scmp.ne.s32.totalorder %s107, %s108
      %p117 = scmp.eq.s32.totalorder %s34, 0
      %p118 = por %p116, %p117
      %p119 = scmp.ne.s32.totalorder %s107, %s108
      %p120 = scmp.eq.s32.totalorder %s35, 3
      %p121 = por %p119, %p120
      %p123 = scmp.ne.s32.totalorder %s108, %s122
      %p124 = scmp.eq.s32.totalorder %s35, 0
      %p125 = por %p123, %p124
      %s127 = sadd.s32 %s126, 1
      %p130 = scmp.eq.s32.totalorder %s29, 3
      %p131 = scmp.ne.s32.totalorder %s126, %s128
      %p132 = scmp.eq.s32.totalorder %s29, 0
      %p133 = por %p131, %p132
      %p134 = scmp.ne.s32.totalorder %s126, %s128
      %p135 = scmp.eq.s32.totalorder %s34, 3
      %p136 = por %p134, %p135
      %p137 = scmp.ne.s32.totalorder %s128, %s129
      %p138 = scmp.eq.s32.totalorder %s34, 0
      %p139 = por %p137, %p138
      %p140 = scmp.ne.s32.totalorder %s128, %s129
      %p141 = scmp.eq.s32.totalorder %s35, 3
      %p142 = por %p140, %p141
      %p144 = scmp.ne.s32.totalorder %s129, %s143
      %p145 = scmp.eq.s32.totalorder %s35, 0
      %p146 = por %p144, %p145
      %s148 = sadd.s32 %s147, 1
      %p151 = scmp.eq.s32.totalorder %s29, 3
      %p152 = scmp.ne.s32.totalorder %s147, %s149
      %p153 = scmp.eq.s32.totalorder %s29, 0
      %p154 = por %p152, %p153
      %p155 = scmp.ne.s32.totalorder %s147, %s149
      %p156 = scmp.eq.s32.totalorder %s34, 3
      %p157 = por %p155, %p156
      %p158 = scmp.ne.s32.totalorder %s149, %s150
      %p159 = scmp.eq.s32.totalorder %s34, 0
      %p160 = por %p158, %p159
      %p161 = scmp.ne.s32.totalorder %s149, %s150
      %p162 = scmp.eq.s32.totalorder %s35, 3
      %p163 = por %p161, %p162
      %p165 = scmp.ne.s32.totalorder %s150, %s164
      %p166 = scmp.eq.s32.totalorder %s35, 0
      %p167 = por %p165, %p166
      %s169 = sadd.s32 %s168, 1
      %p172 = scmp.eq.s32.totalorder %s29, 3
      %p173 = scmp.ne.s32.totalorder %s168, %s170
      %p174 = scmp.eq.s32.totalorder %s29, 0
      %p175 = por %p173, %p174
      %p176 = scmp.ne.s32.totalorder %s168, %s170
      %p177 = scmp.eq.s32.totalorder %s34, 3
      %p178 = por %p176, %p177
      %p179 = scmp.ne.s32.totalorder %s170, %s171
      %p180 = scmp.eq.s32.totalorder %s34, 0
      %p181 = por %p179, %p180
      %p182 = scmp.ne.s32.totalorder %s170, %s171
      %p183 = scmp.eq.s32.totalorder %s35, 3
      %p184 = por %p182, %p183
      %p186 = scmp.ne.s32.totalorder %s171, %s185
      %p187 = scmp.eq.s32.totalorder %s35, 0
      %p188 = por %p186, %p187
      %s190 = sadd.s32 %s189, 1
      %p193 = scmp.eq.s32.totalorder %s29, 3
      %p194 = scmp.ne.s32.totalorder %s189, %s191
      %p195 = scmp.eq.s32.totalorder %s29, 0
      %p196 = por %p194, %p195
      %p197 = scmp.ne.s32.totalorder %s189, %s191
      %p198 = scmp.eq.s32.totalorder %s34, 3
      %p199 = por %p197, %p198
      %p200 = scmp.ne.s32.totalorder %s191, %s192
      %p201 = scmp.eq.s32.totalorder %s34, 0
      %p202 = por %p200, %p201
      %p203 = scmp.ne.s32.totalorder %s191, %s192
      %p204 = scmp.eq.s32.totalorder %s35, 3
      %p205 = por %p203, %p204
      %p207 = scmp.ne.s32.totalorder %s192, %s206
      %p208 = scmp.eq.s32.totalorder %s35, 0
      %p209 = por %p207, %p208
      %s211 = sadd.s32 %s210, 1
      %p214 = scmp.eq.s32.totalorder %s29, 3
      %p215 = scmp.ne.s32.totalorder %s210, %s212
      %p216 = scmp.eq.s32.totalorder %s29, 0
      %p217 = por %p215, %p216
      %p218 = scmp.ne.s32.totalorder %s210, %s212
      %p219 = scmp.eq.s32.totalorder %s34, 3
      %p220 = por %p218, %p219
      %p221 = scmp.ne.s32.totalorder %s212, %s213
      %p222 = scmp.eq.s32.totalorder %s34, 0
      %p223 = por %p221, %p222
      %p224 = scmp.ne.s32.totalorder %s212, %s213
      %p225 = scmp.eq.s32.totalorder %s35, 3
      %p226 = por %p224, %p225
      %p228 = scmp.ne.s32.totalorder %s213, %s227
      %p229 = scmp.eq.s32.totalorder %s35, 0
      %p230 = por %p228, %p229
      %s232 = sadd.s32 %s231, 1
      %p235 = scmp.eq.s32.totalorder %s29, 3
      %p236 = scmp.ne.s32.totalorder %s231, %s233
      %p237 = scmp.eq.s32.totalorder %s29, 0
      %p238 = por %p236, %p237
      %p239 = scmp.ne.s32.totalorder %s231, %s233
      %p240 = scmp.eq.s32.totalorder %s34, 3
      %p241 = por %p239, %p240
      %p242 = scmp.ne.s32.totalorder %s233, %s234
      %p243 = scmp.eq.s32.totalorder %s34, 0
      %p244 = por %p242, %p243
      %p245 = scmp.ne.s32.totalorder %s233, %s234
      %p246 = scmp.eq.s32.totalorder %s35, 3
      %p247 = por %p245, %p246
      %p249 = scmp.ne.s32.totalorder %s234, %s248
      %p250 = scmp.eq.s32.totalorder %s35, 0
      %p251 = por %p249, %p250
      %s253 = sadd.s32 %s252, 1
      %p256 = scmp.eq.s32.totalorder %s29, 3
      %p257 = scmp.ne.s32.totalorder %s252, %s254
      %p258 = scmp.eq.s32.totalorder %s29, 0
      %p259 = por %p257, %p258
      %p260 = scmp.ne.s32.totalorder %s252, %s254
      %p261 = scmp.eq.s32.totalorder %s34, 3
      %p262 = por %p260, %p261
      %p263 = scmp.ne.s32.totalorder %s254, %s255
      %p264 = scmp.eq.s32.totalorder %s34, 0
      %p265 = por %p263, %p264
      %p266 = scmp.ne.s32.totalorder %s254, %s255
      %p267 = scmp.eq.s32.totalorder %s35, 3
      %p268 = por %p266, %p267
      %p270 = scmp.ne.s32.totalorder %s255, %s269
      %p271 = scmp.eq.s32.totalorder %s35, 0
      %p272 = por %p270, %p271
      %s274 = sadd.s32 %s273, 1
      %p277 = scmp.eq.s32.totalorder %s29, 3
      %p278 = scmp.ne.s32.totalorder %s273, %s275
      %p279 = scmp.eq.s32.totalorder %s29, 0
      %p280 = por %p278, %p279
      %p281 = scmp.ne.s32.totalorder %s273, %s275
      %p282 = scmp.eq.s32.totalorder %s34, 3
      %p283 = por %p281, %p282
      %p284 = scmp.ne.s32.totalorder %s275, %s276
      %p285 = scmp.eq.s32.totalorder %s34, 0
      %p286 = por %p284, %p285
      %p287 = scmp.ne.s32.totalorder %s275, %s276
      %p288 = scmp.eq.s32.totalorder %s35, 3
      %p289 = por %p287, %p288
      %p291 = scmp.ne.s32.totalorder %s276, %s290
      %p292 = scmp.eq.s32.totalorder %s35, 0
      %p293 = por %p291, %p292
      %s295 = sadd.s32 %s294, 1
      %p298 = scmp.eq.s32.totalorder %s29, 3
      %p299 = scmp.ne.s32.totalorder %s294, %s296
      %p300 = scmp.eq.s32.totalorder %s29, 0
      %p301 = por %p299, %p300
      %p302 = scmp.ne.s32.totalorder %s294, %s296
      %p303 = scmp.eq.s32.totalorder %s34, 3
      %p304 = por %p302, %p303
      %p305 = scmp.ne.s32.totalorder %s296, %s297
      %p306 = scmp.eq.s32.totalorder %s34, 0
      %p307 = por %p305, %p306
      %p308 = scmp.ne.s32.totalorder %s296, %s297
      %p309 = scmp.eq.s32.totalorder %s35, 3
      %p310 = por %p308, %p309
      %p312 = scmp.ne.s32.totalorder %s297, %s311
      %p313 = scmp.eq.s32.totalorder %s35, 0
      %p314 = por %p312, %p313
      %s315 = ssub.s32 %s36, %s48
      %s316 = ssub.s32 %s37, %s44
      %s317 = sor.u32 %s315, %s316
      %p318 = scmp.eq.s32.totalorder %s317, 0
      %s320 = sadd.s32 %s319, 1
      %s321 = scalar_select %p318, %s319, %s320
      %p324 = pneg %p318
      %p325 = scmp.eq.s32.totalorder %s29, 3
      %p326 = por %p324, %p325
      %p327 = scmp.ne.s32.totalorder %s319, %s322
      %p328 = scmp.eq.s32.totalorder %s29, 0
      %p329 = por %p327, %p328
      %p330 = scmp.ne.s32.totalorder %s319, %s322
      %p331 = scmp.eq.s32.totalorder %s34, 3
      %p332 = por %p330, %p331
      %p333 = scmp.ne.s32.totalorder %s322, %s323
      %p334 = scmp.eq.s32.totalorder %s34, 0
      %p335 = por %p333, %p334
      %p336 = scmp.ne.s32.totalorder %s322, %s323
      %p337 = scmp.eq.s32.totalorder %s35, 3
      %p338 = por %p336, %p337
      %p340 = scmp.ne.s32.totalorder %s323, %s339
      %p341 = scmp.eq.s32.totalorder %s35, 0
      %p342 = por %p340, %p341
      %p343 = scmp.le.s32.totalorder 1, %s29
      %p344 = scmp.lt.s32.totalorder %s29, 5
      %p345 = pnand %p343, %p344
      %p346 = pneg %p345
      // Predicated region
      $region9: #{tpu_custom_call.1} parent=5 // pred_check
        _
      $region10: #{tpu_custom_call.1} parent=5 // pred_check_branch
        %348 = sbr.rel (%p345) target = $region12
      $region11: #{tpu_custom_call.1} parent=5 // pred_region
        %s349 = ssub.s32 %s29, 1
        // Predicated region
        $region13: #{tpu_custom_call.1} parent=11 // pred_check
          %p350 = pneg %p118
        $region14: #{tpu_custom_call.1} parent=11 // pred_check_branch
          %352 = sbr.rel (%p350) target = $region16
        $region15: #{tpu_custom_call.1} parent=11 // pred_region
          _
        $region16: #{tpu_custom_call.1} parent=11 // pred_fallthru
          _
        // Predicated region
        $region17: #{tpu_custom_call.1} parent=11 // pred_check
          %p353 = pneg %p139
        $region18: #{tpu_custom_call.1} parent=11 // pred_check_branch
          %355 = sbr.rel (%p353) target = $region20
        $region19: #{tpu_custom_call.1} parent=11 // pred_region
          _
        $region20: #{tpu_custom_call.1} parent=11 // pred_fallthru
          _
        // Predicated region
        $region21: #{tpu_custom_call.1} parent=11 // pred_check
          %p356 = pneg %p160
        $region22: #{tpu_custom_call.1} parent=11 // pred_check_branch
          %358 = sbr.rel (%p356) target = $region24
        $region23: #{tpu_custom_call.1} parent=11 // pred_region
          %s360 = ssub.s32 1024, 1024
          %361 = vsyncadd [#allocation6], %s360
          %s362 = sshll.u32 [#allocation7], 4
          %s363 = int_to_ptr.vmem [resolvable:$true] %s362
          %368 = dma.hbm_to_vmem [thread:$0]  %s4, 1024, %s363, [#allocation6], 64, 64, 4
        $region24: #{tpu_custom_call.1} parent=11 // pred_fallthru
          _
        // Predicated region
        $region25: #{tpu_custom_call.1} parent=11 // pred_check
          %p369 = pneg %p181
        $region26: #{tpu_custom_call.1} parent=11 // pred_check_branch
          %371 = sbr.rel (%p369) target = $region28
        $region27: #{tpu_custom_call.1} parent=11 // pred_region
          _
        $region28: #{tpu_custom_call.1} parent=11 // pred_fallthru
          _
        // Predicated region
        $region29: #{tpu_custom_call.1} parent=11 // pred_check
          %p372 = pneg %p202
        $region30: #{tpu_custom_call.1} parent=11 // pred_check_branch
          %374 = sbr.rel (%p372) target = $region32
        $region31: #{tpu_custom_call.1} parent=11 // pred_region
          _
        $region32: #{tpu_custom_call.1} parent=11 // pred_fallthru
          _
        // Predicated region
        $region33: #{tpu_custom_call.1} parent=11 // pred_check
          %p375 = pneg %p223
        $region34: #{tpu_custom_call.1} parent=11 // pred_check_branch
          %377 = sbr.rel (%p375) target = $region36
        $region35: #{tpu_custom_call.1} parent=11 // pred_region
          %s379 = ssub.s32 9216, 9216
          %380 = vsyncadd [#allocation9], %s379
          %s381 = sshll.u32 [#allocation8], 4
          %s382 = int_to_ptr.vmem [resolvable:$true] %s381
          %387 = dma.hbm_to_vmem [thread:$0]  %s7, 9216, %s382, [#allocation9], 64, 64, 4
        $region36: #{tpu_custom_call.1} parent=11 // pred_fallthru
          _
        // Predicated region
        $region37: #{tpu_custom_call.1} parent=11 // pred_check
          %p388 = pneg %p244
        $region38: #{tpu_custom_call.1} parent=11 // pred_check_branch
          %390 = sbr.rel (%p388) target = $region40
        $region39: #{tpu_custom_call.1} parent=11 // pred_region
          _
        $region40: #{tpu_custom_call.1} parent=11 // pred_fallthru
          _
        // Predicated region
        $region41: #{tpu_custom_call.1} parent=11 // pred_check
          %p391 = pneg %p265
        $region42: #{tpu_custom_call.1} parent=11 // pred_check_branch
          %393 = sbr.rel (%p391) target = $region44
        $region43: #{tpu_custom_call.1} parent=11 // pred_region
          _
        $region44: #{tpu_custom_call.1} parent=11 // pred_fallthru
          _
        // Predicated region
        $region45: #{tpu_custom_call.1} parent=11 // pred_check
          %p394 = pneg %p286
        $region46: #{tpu_custom_call.1} parent=11 // pred_check_branch
          %396 = sbr.rel (%p394) target = $region48
        $region47: #{tpu_custom_call.1} parent=11 // pred_region
          %s398 = ssub.s32 1024, 1024
          %399 = vsyncadd [#allocation9], %s398
          %s400 = sshll.u32 [#allocation10], 4
          %s401 = int_to_ptr.vmem [resolvable:$true] %s400
          %406 = dma.hbm_to_vmem [thread:$0]  %s10, 1024, %s401, [#allocation9], 64, 64, 4
        $region48: #{tpu_custom_call.1} parent=11 // pred_fallthru
          _
        // Predicated region
        $region49: #{tpu_custom_call.1} parent=11 // pred_check
          %p407 = pneg %p307
        $region50: #{tpu_custom_call.1} parent=11 // pred_check_branch
          %409 = sbr.rel (%p407) target = $region52
        $region51: #{tpu_custom_call.1} parent=11 // pred_region
          %s411 = ssub.s32 1024, 1024
          %412 = vsyncadd [#allocation12], %s411
          %s413 = sshll.u32 [#allocation11], 4
          %s414 = int_to_ptr.vmem [resolvable:$true] %s413
          %419 = dma.hbm_to_vmem [thread:$0]  %s11, 1024, %s414, [#allocation12], 64, 64, 4
        $region52: #{tpu_custom_call.1} parent=11 // pred_fallthru
          _
      $region12: #{tpu_custom_call.1} parent=5 // pred_fallthru
        _
      %p420 = scmp.lt.s32.totalorder %s29, 4
      // Predicated region
      $region53: #{tpu_custom_call.1} parent=5 // pred_check
        %p421 = pneg %p420
      $region54: #{tpu_custom_call.1} parent=5 // pred_check_branch
        %423 = sbr.rel (%p421) target = $region56
      $region55: #{tpu_custom_call.1} parent=5 // pred_region
        // Predicated region
        $region57: #{tpu_custom_call.1} parent=55 // pred_check
          %p424 = pneg %p63
        $region58: #{tpu_custom_call.1} parent=55 // pred_check_branch
          %426 = sbr.rel (%p424) target = $region60
        $region59: #{tpu_custom_call.1} parent=55 // pred_region
          %s427 = sand.u32 %s53, 1
          %s428 = scalar_lea.sflag [#allocation3], %s427
          %s429 = sand.u32 %s53, 1
          %s430 = smul.addr %s429, 16
          %s431 = scalar_lea.vmem [#allocation2], %s430
          %s432 = smul.u32 4, %s37
          %s434 = ssub.s32 256, 256
          %435 = vsyncadd %s428, %s434
          %s436 = smul.addr %s36, 8
          %s437 = sadd.s32 %s432, %s436
          %s438 = smul.addr %s437, 64
          %s439 = scalar_lea.hbm %s0, %s438
          %s440 = sshll.u32 %s431, 4
          %s441 = int_to_ptr.vmem [resolvable:$true] %s440
          %446 = dma.hbm_to_vmem [thread:$0]  %s439, 256, %s441, %s428, 64, 64, 4
        $region60: #{tpu_custom_call.1} parent=55 // pred_fallthru
          _
        // Predicated region
        $region61: #{tpu_custom_call.1} parent=55 // pred_check
          %p447 = pneg %p91
        $region62: #{tpu_custom_call.1} parent=55 // pred_check_branch
          %449 = sbr.rel (%p447) target = $region64
        $region63: #{tpu_custom_call.1} parent=55 // pred_region
          %s450 = sand.u32 %s29, 1
          %s451 = scalar_lea.sflag [#allocation6], %s450
          %s452 = sand.u32 %s81, 1
          %s453 = smul.addr %s452, 8
          %s454 = scalar_lea.vmem [#allocation5], %s453
          %s456 = ssub.s32 128, 128
          %457 = vsyncadd %s451, %s456
          %s458 = smul.addr %s37, 2
          %s459 = smul.addr %s36, 4
          %s460 = sadd.s32 %s458, %s459
          %s461 = smul.addr %s460, 64
          %s462 = scalar_lea.hbm %s1, %s461
          %s463 = sshll.u32 %s454, 4
          %s464 = int_to_ptr.vmem [resolvable:$true] %s463
          %469 = dma.hbm_to_vmem [thread:$0]  %s462, 128, %s464, %s451, 64, 64, 4
        $region64: #{tpu_custom_call.1} parent=55 // pred_fallthru
          _
      $region56: #{tpu_custom_call.1} parent=5 // pred_fallthru
        _
      %p470 = scmp.le.s32.totalorder 1, %s29
      %p471 = scmp.lt.s32.totalorder %s29, 5
      %p472 = pnand %p470, %p471
      %p473 = pneg %p472
      // Predicated region
      $region65: #{tpu_custom_call.1} parent=5 // pred_check
        _
      $region66: #{tpu_custom_call.1} parent=5 // pred_check_branch
        %475 = sbr.rel (%p472) target = $region68
      $region67: #{tpu_custom_call.1} parent=5 // pred_region
        %s476 = ssub.s32 %s29, 1
        %s477 = sand.u32 %s56, 1
        %s478 = scalar_lea.sflag [#allocation3], %s477
        %s479 = sand.u32 %s56, 1
        %s480 = smul.addr %s479, 16
        %s481 = scalar_lea.vmem [#allocation2], %s480
        // Predicated region
        $region69: #{tpu_custom_call.1} parent=67 // pred_check
          %p482 = pneg %p69
        $region70: #{tpu_custom_call.1} parent=67 // pred_check_branch
          %484 = sbr.rel (%p482) target = $region72
        $region71: #{tpu_custom_call.1} parent=67 // pred_region
          %485 = dma.done %s478, 256
        $region72: #{tpu_custom_call.1} parent=67 // pred_fallthru
          _
        %s486 = sand.u32 %s34, 1
        %s487 = scalar_lea.sflag [#allocation6], %s486
        %s488 = sand.u32 %s84, 1
        %s489 = smul.addr %s488, 8
        %s490 = scalar_lea.vmem [#allocation5], %s489
        // Predicated region
        $region73: #{tpu_custom_call.1} parent=67 // pred_check
          %p491 = pneg %p97
        $region74: #{tpu_custom_call.1} parent=67 // pred_check_branch
          %493 = sbr.rel (%p491) target = $region76
        $region75: #{tpu_custom_call.1} parent=67 // pred_region
          %494 = dma.done %s487, 128
        $region76: #{tpu_custom_call.1} parent=67 // pred_fallthru
          _
        // Predicated region
        $region77: #{tpu_custom_call.1} parent=67 // pred_check
          %p495 = pneg %p160
        $region78: #{tpu_custom_call.1} parent=67 // pred_check_branch
          %497 = sbr.rel (%p495) target = $region80
        $region79: #{tpu_custom_call.1} parent=67 // pred_region
          %498 = dma.done [#allocation6], 1024
        $region80: #{tpu_custom_call.1} parent=67 // pred_fallthru
          _
        // Predicated region
        $region81: #{tpu_custom_call.1} parent=67 // pred_check
          %p499 = pneg %p223
        $region82: #{tpu_custom_call.1} parent=67 // pred_check_branch
          %501 = sbr.rel (%p499) target = $region84
        $region83: #{tpu_custom_call.1} parent=67 // pred_region
          %502 = dma.done [#allocation9], 9216
        $region84: #{tpu_custom_call.1} parent=67 // pred_fallthru
          _
        // Predicated region
        $region85: #{tpu_custom_call.1} parent=67 // pred_check
          %p503 = pneg %p286
        $region86: #{tpu_custom_call.1} parent=67 // pred_check_branch
          %505 = sbr.rel (%p503) target = $region88
        $region87: #{tpu_custom_call.1} parent=67 // pred_region
          %506 = dma.done [#allocation9], 1024
        $region88: #{tpu_custom_call.1} parent=67 // pred_fallthru
          _
        // Predicated region
        $region89: #{tpu_custom_call.1} parent=67 // pred_check
          %p507 = pneg %p307
        $region90: #{tpu_custom_call.1} parent=67 // pred_check_branch
          %509 = sbr.rel (%p507) target = $region92
        $region91: #{tpu_custom_call.1} parent=67 // pred_region
          %510 = dma.done [#allocation12], 1024
        $region92: #{tpu_custom_call.1} parent=67 // pred_fallthru
          _
        %s511 = sand.u32 %s56, 1
        %s512 = scalar_lea.sflag [#allocation3], %s511
        %s513 = sand.u32 %s56, 1
        %s514 = smul.addr %s513, 16
        %s515 = scalar_lea.vmem [#allocation2], %s514
        %p516 = pneg %p69
        %p517 = pneg %p66
        %s518 = sand.u32 %s34, 1
        %s519 = scalar_lea.sflag [#allocation6], %s518
        %s520 = sand.u32 %s84, 1
        %s521 = smul.addr %s520, 8
        %s522 = scalar_lea.vmem [#allocation5], %s521
        %p523 = pneg %p97
        %p524 = pneg %p94
        %p525 = pneg %p118
        %p526 = pneg %p115
        %p527 = pneg %p139
        %p528 = pneg %p136
        %p529 = pneg %p160
        %p530 = pneg %p157
        %p531 = pneg %p181
        %p532 = pneg %p178
        %p533 = pneg %p202
        %p534 = pneg %p199
        %p535 = pneg %p223
        %p536 = pneg %p220
        %p537 = pneg %p244
        %p538 = pneg %p241
        %p539 = pneg %p265
        %p540 = pneg %p262
        %p541 = pneg %p286
        %p542 = pneg %p283
        %p543 = pneg %p307
        %p544 = pneg %p304
        %p545 = pneg %p335
        %p546 = pneg %p332
        %s547 = sand.u32 %s322, 1
        %s548 = scalar_lea.sflag [#allocation4], %s547
        %s549 = sand.u32 %s322, 1
        %s550 = smul.addr %s549, 16
        %s551 = scalar_lea.vmem [#allocation13], %s550
        %s552 = smul.u32 4, %s39
        %s553 = smul.u32 4, %s39
        %v555 = vld [vmem:[%s490] sm:$0xf]
        %v556 = vld [vmem:[%s481] sm:$0xf]
        %v557 = vld [vmem:[%s481 + $0x4] sm:$0xf]
        %v558 = vld [vmem:[%s481 + $0x8] sm:$0xf]
        %v559 = vld [vmem:[%s481 + $0xc] sm:$0xf]
        %s560 = scalar_lea.vmem %s490, 4 [#allocation5]
        %v561 = vld [vmem:[%s560] sm:$0xf]
        %v562 = vunpack.c.l.bf16 %v555
        %v563 = vunpack.c.l.bf16 %v556
        %v564 = vunpack.c.l.bf16 %v557
        %v565 = vunpack.c.l.bf16 %v558
        %v566 = vunpack.c.l.bf16 %v559
        %v567 = vunpack.c.l.bf16 %v561
        %v568 = vld [vmem:[%s2] sm:$0x1]
        %v570 = vlaneseq
        %v571 = vshrl.u32 %v570, 7
        %v572 = vsub.s32 0, %v571
        %v573 = vrot.slane %v568, %v572
        %v575 = vmul.f32 %v562, %v573
        %v576 = vmul.f32 %v563, %v573
        %v577 = vmul.f32 %v564, %v573
        %v578 = vmul.f32 %v565, %v573
        %v579 = vmul.f32 %v566, %v573
        %v580 = vmul.f32 %v567, %v573
        %v581 = vld [vmem:[%s3] sm:$0x1]
        %v583 = vlaneseq
        %v584 = vshrl.u32 %v583, 7
        %v585 = vsub.s32 0, %v584
        %v586 = vrot.slane %v581, %v585
        %v588 = vadd.f32 %v575, %v586
        %v589 = vadd.f32 %v576, %v586
        %v590 = vadd.f32 %v577, %v586
        %v591 = vadd.f32 %v578, %v586
        %v592 = vadd.f32 %v579, %v586
        %v593 = vadd.f32 %v580, %v586
        %v594 = vmax.f32 %v588, 0.0
        %v595 = vmax.f32 %v589, 0.0
        %v596 = vmax.f32 %v590, 0.0
        %v597 = vmax.f32 %v591, 0.0
        %v598 = vmax.f32 %v592, 0.0
        %v599 = vmax.f32 %v593, 0.0
        %v600 = vpack.c.bf16 %v594, %v594
        %v601 = vpack.c.bf16 %v595, %v595
        %v602 = vpack.c.bf16 %v596, %v596
        %v603 = vpack.c.bf16 %v597, %v597
        %v604 = vpack.c.bf16 %v598, %v598
        %v605 = vpack.c.bf16 %v599, %v599
        %v606 = vld [vmem:[#allocation7] sm:$0xf]
        %v607 = vld [vmem:[#allocation7 + $0x4] sm:$0xf]
        %v608 = vld [vmem:[#allocation7 + $0x8] sm:$0xf]
        %v609 = vld [vmem:[#allocation7 + $0xc] sm:$0xf]
        %v610 = vld [vmem:[#allocation7 + $0x10] sm:$0xf]
        %v611 = vld [vmem:[#allocation7 + $0x14] sm:$0xf]
        %v612 = vld [vmem:[#allocation7 + $0x18] sm:$0xf]
        %v613 = vld [vmem:[#allocation7 + $0x1c] sm:$0xf]
        %v614 = vld [vmem:[#allocation7 + $0x20] sm:$0xf]
        %v615 = vld [vmem:[#allocation7 + $0x24] sm:$0xf]
        %v616 = vld [vmem:[#allocation7 + $0x28] sm:$0xf]
        %v617 = vld [vmem:[#allocation7 + $0x2c] sm:$0xf]
        %v618 = vld [vmem:[#allocation7 + $0x30] sm:$0xf]
        %v619 = vld [vmem:[#allocation7 + $0x34] sm:$0xf]
        %v620 = vld [vmem:[#allocation7 + $0x38] sm:$0xf]
        %v621 = vld [vmem:[#allocation7 + $0x3c] sm:$0xf]
        %v628 = vunpack.c.l.b16 %v600
        %v629 = vunpack.c.l.b16 %v601
        %v630 = vunpack.c.l.b16 %v602
        %v631 = vunpack.c.l.b16 %v603
        %v632 = vunpack.c.l.b16 %v604
        %v633 = vunpack.c.l.b16 %v605
        %v634 = vpack.c.b16 %v629, %v628
        %v635 = vpack.c.b16 %v631, %v630
        %v636 = vpack.c.b16 %v633, %v632
        %v656 = vunpack.c.l.b16 %v606
        %v657 = vunpack.c.l.b16 %v607
        %v658 = vunpack.c.l.b16 %v608
        %v659 = vunpack.c.l.b16 %v609
        %v660 = vunpack.c.l.b16 %v610
        %v661 = vunpack.c.l.b16 %v611
        %v662 = vunpack.c.l.b16 %v612
        %v663 = vunpack.c.l.b16 %v613
        %v664 = vunpack.c.l.b16 %v614
        %v665 = vunpack.c.l.b16 %v615
        %v666 = vunpack.c.l.b16 %v616
        %v667 = vunpack.c.l.b16 %v617
        %v668 = vunpack.c.l.b16 %v618
        %v669 = vunpack.c.l.b16 %v619
        %v670 = vunpack.c.l.b16 %v620
        %v671 = vunpack.c.l.b16 %v621
        %v672 = vpack.c.b16 %v657, %v656
        %v673 = vpack.c.b16 %v659, %v658
        %v674 = vpack.c.b16 %v661, %v660
        %v675 = vpack.c.b16 %v663, %v662
        %v676 = vpack.c.b16 %v665, %v664
        %v677 = vpack.c.b16 %v667, %v666
        %v678 = vpack.c.b16 %v669, %v668
        %v679 = vpack.c.b16 %v671, %v670
        %688 = vmatprep.subr.bf16.mxu0 0
        %689 = vmatpush1.bf16.msra.mxu0 %v672
        %690 = vmatprep.subr.bf16.mxu0 0
        %691 = vmatpush1.bf16.msra.mxu0 %v673
        %692 = vmatprep.subr.bf16.mxu0 0
        %693 = vmatpush1.bf16.msra.mxu0 %v674
        %694 = vmatprep.subr.bf16.mxu0 0
        %695 = vmatpush1.bf16.msra.mxu0 %v675
        %696 = vmatprep.subr.bf16.mxu0 0
        %697 = vmatpush1.bf16.msra.mxu0 %v676
        %698 = vmatprep.subr.bf16.mxu0 0
        %699 = vmatpush1.bf16.msra.mxu0 %v677
        %700 = vmatprep.subr.bf16.mxu0 0
        %701 = vmatpush1.bf16.msra.mxu0 %v678
        %702 = vmatprep.subr.bf16.mxu0 0
        %703 = vmatpush1.bf16.msra.mxu0 %v679
        %704 = vmatprep.subr.bf16.mxu0 0
        %705 = vmatpush1.bf16.msra.mxu0 0
        %706 = vmatprep.subr.bf16.mxu0 0
        %707 = vmatpush1.bf16.msra.mxu0 0
        %708 = vmatprep.subr.bf16.mxu0 0
        %709 = vmatpush1.bf16.msra.mxu0 0
        %710 = vmatprep.subr.bf16.mxu0 0
        %711 = vmatpush1.bf16.msra.mxu0 0
        %712 = vmatprep.subr.bf16.mxu0 0
        %713 = vmatpush1.bf16.msra.mxu0 0
        %714 = vmatprep.subr.bf16.mxu0 0
        %715 = vmatpush1.bf16.msra.mxu0 0
        %716 = vmatprep.subr.bf16.mxu0 0
        %717 = vmatpush1.bf16.msra.mxu0 0
        %718 = vmatprep.subr.bf16.mxu0 0
        %719 = vmatpush1.bf16.msra.mxu0 0
        %720 = vmatprep.mubr.bf16.mxu0 0
        %721 = vmatmul.mubr.bf16.gmra.mrb[0].mxu0 %v634
        %v722 = vpop.f32.mrb[0].mxu0
        %v723 = vadd.f32 0.0, %v722
        %v724 = vpop.f32.mrb[0].mxu0
        %v725 = vpop.f32.mrb[0].mxu0
        %v726 = vadd.f32 0.0, %v725
        %v727 = vpop.f32.mrb[0].mxu0
        %728 = vmatprep.mubr.bf16.mxu0 0
        %729 = vmatmul.mubr.bf16.gmra.mrb[0].mxu0 %v635
        %v730 = vpop.f32.mrb[0].mxu0
        %v731 = vadd.f32 0.0, %v730
        %v732 = vpop.f32.mrb[0].mxu0
        %v733 = vpop.f32.mrb[0].mxu0
        %v734 = vadd.f32 0.0, %v733
        %v735 = vpop.f32.mrb[0].mxu0
        %736 = vmatprep.mubr.bf16.mxu0 0
        %737 = vmatmul.mubr.bf16.gmra.mrb[0].mxu0 %v636
        %v738 = vpop.f32.mrb[0].mxu0
        %v739 = vadd.f32 0.0, %v738
        %v740 = vpop.f32.mrb[0].mxu0
        %v741 = vpop.f32.mrb[0].mxu0
        %v742 = vadd.f32 0.0, %v741
        %v743 = vpop.f32.mrb[0].mxu0
        %744 = vdwg.mxu0
        %v745 = vld [vmem:[%s5] sm:$0x1]
        %v747 = vlaneseq
        %v748 = vshrl.u32 %v747, 7
        %v749 = vsub.s32 0, %v748
        %v750 = vrot.slane %v745, %v749
        %v752 = vmul.f32 %v723, %v750
        %v753 = vmul.f32 %v726, %v750
        %v754 = vmul.f32 %v731, %v750
        %v755 = vmul.f32 %v734, %v750
        %v756 = vmul.f32 %v739, %v750
        %v757 = vmul.f32 %v742, %v750
        %v758 = vld [vmem:[%s6] sm:$0x1]
        %v760 = vlaneseq
        %v761 = vshrl.u32 %v760, 7
        %v762 = vsub.s32 0, %v761
        %v763 = vrot.slane %v758, %v762
        %v765 = vadd.f32 %v752, %v763
        %v766 = vadd.f32 %v753, %v763
        %v767 = vadd.f32 %v754, %v763
        %v768 = vadd.f32 %v755, %v763
        %v769 = vadd.f32 %v756, %v763
        %v770 = vadd.f32 %v757, %v763
        %v771 = vmax.f32 %v765, 0.0
        %v772 = vmax.f32 %v766, 0.0
        %v773 = vmax.f32 %v767, 0.0
        %v774 = vmax.f32 %v768, 0.0
        %v775 = vmax.f32 %v769, 0.0
        %v776 = vmax.f32 %v770, 0.0
        %v777 = vpack.c.bf16 %v772, %v771
        %v778 = vpack.c.bf16 %v774, %v773
        %v779 = vpack.c.bf16 %v776, %v775
        %v783 = vunpack.c.l.b16 %v777
        %v784 = vunpack.c.h.b16 %v777
        %v785 = vunpack.c.l.b16 %v778
        %v786 = vunpack.c.h.b16 %v778
        %v787 = vunpack.c.l.b16 %v779
        %v788 = vunpack.c.h.b16 %v779
        %v789 = vpack.c.b16 %v783, %v783
        %v790 = vpack.c.b16 %v784, %v784
        %v791 = vpack.c.b16 %v785, %v785
        %v792 = vpack.c.b16 %v786, %v786
        %v793 = vpack.c.b16 %v787, %v787
        %v794 = vpack.c.b16 %v788, %v788
        %s801 = smul.u32 %s39, 4
        %s802 = ssub.s32 %s801, 1
        %v803 = vstv %s802
        %v804 = vadd.s32 %v803, 1
        %v805 = vadd.s32 %v803, 2
        %v806 = vadd.s32 %v803, 3
        %v807 = vadd.s32 %v803, 4
        %v808 = vadd.s32 %v803, 5
        %vm809 = vcmp.ge.s32.totalorder %v803, 0
        %vm810 = vcmp.ge.s32.totalorder %v804, 0
        %vm811 = vcmp.ge.s32.totalorder %v805, 0
        %vm812 = vcmp.ge.s32.totalorder %v806, 0
        %vm813 = vcmp.ge.s32.totalorder %v807, 0
        %vm814 = vcmp.ge.s32.totalorder %v808, 0
        %vm815 = vcmp.lt.s32.totalorder %v803, 8
        %vm816 = vcmp.lt.s32.totalorder %v804, 8
        %vm817 = vcmp.lt.s32.totalorder %v805, 8
        %vm818 = vcmp.lt.s32.totalorder %v806, 8
        %vm819 = vcmp.lt.s32.totalorder %v807, 8
        %vm820 = vcmp.lt.s32.totalorder %v808, 8
        %vm821 = vmand %vm809, %vm815
        %vm822 = vmand %vm810, %vm816
        %vm823 = vmand %vm811, %vm817
        %vm824 = vmand %vm812, %vm818
        %vm825 = vmand %vm813, %vm819
        %vm826 = vmand %vm814, %vm820
        %v827 = vsel %vm821, 1, 0
        %v828 = vsel %vm822, 1, 0
        %v829 = vsel %vm823, 1, 0
        %v830 = vsel %vm824, 1, 0
        %v831 = vsel %vm825, 1, 0
        %v832 = vsel %vm826, 1, 0
        %vm833 = vcmp.eq.s32.totalorder %v827, 1
        %vm834 = vcmp.eq.s32.totalorder %v828, 1
        %vm835 = vcmp.eq.s32.totalorder %v829, 1
        %vm836 = vcmp.eq.s32.totalorder %v830, 1
        %vm837 = vcmp.eq.s32.totalorder %v831, 1
        %vm838 = vcmp.eq.s32.totalorder %v832, 1
        %v839 = vsel %vm833, %v789, 0
        %v840 = vsel %vm834, %v790, 0
        %v841 = vsel %vm835, %v791, 0
        %v842 = vsel %vm836, %v792, 0
        %v843 = vsel %vm837, %v793, 0
        %v844 = vsel %vm838, %v794, 0
        %v851 = vunpack.c.l.b16 %v839
        %v852 = vunpack.c.l.b16 %v840
        %v853 = vunpack.c.l.b16 %v841
        %v854 = vunpack.c.l.b16 %v842
        %v855 = vunpack.c.l.b16 %v843
        %v856 = vunpack.c.l.b16 %v844
        %v857 = vpack.c.b16 %v851, %v851
        %v858 = vpack.c.b16 %v852, %v852
        %v859 = vpack.c.b16 %v853, %v853
        %v860 = vpack.c.b16 %v854, %v854
        %v861 = vpack.c.b16 %v855, %v855
        %v862 = vpack.c.b16 %v856, %v856
        %v864 = vshrl.u32 %v857, 16
        %v866 = vrot.slane %v864, 7
        %v867 = vshll.u32 %v857, 16
        %v869 = vor.u32 %v866, %v867
        %v871 = vshrl.u32 %v858, 16
        %v873 = vrot.slane %v871, 7
        %v874 = vshll.u32 %v858, 16
        %v876 = vor.u32 %v873, %v874
        %v878 = vshrl.u32 %v859, 16
        %v880 = vrot.slane %v878, 7
        %v881 = vshll.u32 %v859, 16
        %v883 = vor.u32 %v880, %v881
        %v885 = vshrl.u32 %v860, 16
        %v887 = vrot.slane %v885, 7
        %v888 = vshll.u32 %v860, 16
        %v890 = vor.u32 %v887, %v888
        %v892 = vshrl.u32 %v861, 16
        %v894 = vrot.slane %v892, 7
        %v895 = vshll.u32 %v861, 16
        %v897 = vor.u32 %v894, %v895
        %v899 = vshrl.u32 %v862, 16
        %v901 = vrot.slane %v899, 7
        %v902 = vshll.u32 %v862, 16
        %v904 = vor.u32 %v901, %v902
        %vm911 = vcmask 1040384
        %vm912 = vsmask.f32 256
        %vm913 = vmand %vm911, %vm912
        %v914 = vsel %vm913, 0, %v869
        %v915 = vsel %vm913, 0, %v876
        %v916 = vsel %vm913, 0, %v883
        %v917 = vsel %vm913, 0, %v890
        %v918 = vsel %vm913, 0, %v897
        %v919 = vsel %vm913, 0, %v904
        %vm920 = vcmask 1044480
        %vm921 = vsmask.f32 4352
        %vm922 = vmand %vm920, %vm921
        %v923 = vsel %vm922, %v914, 0
        %v924 = vsel %vm922, %v915, 0
        %v925 = vsel %vm922, %v916, 0
        %v926 = vsel %vm922, %v917, 0
        %v927 = vsel %vm922, %v918, 0
        %v928 = vsel %vm922, %v919, 0
        %v930 = vshrl.u32 %v923, 16
        %v932 = vshll.u32 %v923, 16
        %v934 = vrot.slane %v932, 1
        %v935 = vor.u32 %v930, %v934
        %v937 = vshrl.u32 %v924, 16
        %v939 = vshll.u32 %v924, 16
        %v941 = vrot.slane %v939, 1
        %v942 = vor.u32 %v937, %v941
        %v944 = vshrl.u32 %v925, 16
        %v946 = vshll.u32 %v925, 16
        %v948 = vrot.slane %v946, 1
        %v949 = vor.u32 %v944, %v948
        %v951 = vshrl.u32 %v926, 16
        %v953 = vshll.u32 %v926, 16
        %v955 = vrot.slane %v953, 1
        %v956 = vor.u32 %v951, %v955
        %v961 = vrot.slane %v923, 1
        %v962 = vrot.slane %v924, 1
        %v963 = vrot.slane %v925, 1
        %v964 = vrot.slane %v926, 1
        %v965 = vunpack.c.l.b16 %v923
        %v966 = vunpack.c.l.b16 %v935
        %v967 = vunpack.c.l.b16 %v961
        %v968 = vunpack.c.l.b16 %v924
        %v969 = vunpack.c.l.b16 %v942
        %v970 = vunpack.c.l.b16 %v962
        %v971 = vunpack.c.l.b16 %v925
        %v972 = vunpack.c.l.b16 %v949
        %v973 = vunpack.c.l.b16 %v963
        %v974 = vunpack.c.l.b16 %v926
        %v975 = vunpack.c.l.b16 %v956
        %v976 = vunpack.c.l.b16 %v964
        %v977 = vld [vmem:[#allocation8] sm:$0xf]
        %v978 = vld [vmem:[#allocation8 + $0x4] sm:$0xf]
        %v979 = vld [vmem:[#allocation8 + $0x8] sm:$0xf]
        %v980 = vld [vmem:[#allocation8 + $0xc] sm:$0xf]
        %v981 = vld [vmem:[#allocation8 + $0x10] sm:$0xf]
        %v982 = vld [vmem:[#allocation8 + $0x14] sm:$0xf]
        %v983 = vld [vmem:[#allocation8 + $0x18] sm:$0xf]
        %v984 = vld [vmem:[#allocation8 + $0x1c] sm:$0xf]
        %v985 = vld [vmem:[#allocation8 + $0x20] sm:$0xf]
        %v986 = vld [vmem:[#allocation8 + $0x24] sm:$0xf]
        %v987 = vld [vmem:[#allocation8 + $0x28] sm:$0xf]
        %v988 = vld [vmem:[#allocation8 + $0x2c] sm:$0xf]
        %v989 = vld [vmem:[#allocation8 + $0x30] sm:$0xf]
        %v990 = vld [vmem:[#allocation8 + $0x34] sm:$0xf]
        %v991 = vld [vmem:[#allocation8 + $0x38] sm:$0xf]
        %v992 = vld [vmem:[#allocation8 + $0x3c] sm:$0xf]
        %v993 = vld [vmem:[#allocation8 + $0x40] sm:$0xf]
        %v994 = vld [vmem:[#allocation8 + $0x44] sm:$0xf]
        %v995 = vld [vmem:[#allocation8 + $0x48] sm:$0xf]
        %v996 = vld [vmem:[#allocation8 + $0x4c] sm:$0xf]
        %v997 = vld [vmem:[#allocation8 + $0x50] sm:$0xf]
        %v998 = vld [vmem:[#allocation8 + $0x54] sm:$0xf]
        %v999 = vld [vmem:[#allocation8 + $0x58] sm:$0xf]
        %v1000 = vld [vmem:[#allocation8 + $0x5c] sm:$0xf]
        %v1001 = vld [vmem:[#allocation8 + $0x60] sm:$0xf]
        %v1002 = vld [vmem:[#allocation8 + $0x64] sm:$0xf]
        %v1003 = vld [vmem:[#allocation8 + $0x68] sm:$0xf]
        %v1004 = vld [vmem:[#allocation8 + $0x6c] sm:$0xf]
        %v1005 = vld [vmem:[#allocation8 + $0x70] sm:$0xf]
        %v1006 = vld [vmem:[#allocation8 + $0x74] sm:$0xf]
        %v1007 = vld [vmem:[#allocation8 + $0x78] sm:$0xf]
        %v1008 = vld [vmem:[#allocation8 + $0x7c] sm:$0xf]
        %v1009 = vld [vmem:[#allocation8 + $0x80] sm:$0xf]
        %v1010 = vld [vmem:[#allocation8 + $0x84] sm:$0xf]
        %v1011 = vld [vmem:[#allocation8 + $0x88] sm:$0xf]
        %v1012 = vld [vmem:[#allocation8 + $0x8c] sm:$0xf]
        %v1013 = vld [vmem:[#allocation8 + $0x90] sm:$0xf]
        %v1014 = vld [vmem:[#allocation8 + $0x94] sm:$0xf]
        %v1015 = vld [vmem:[#allocation8 + $0x98] sm:$0xf]
        %v1016 = vld [vmem:[#allocation8 + $0x9c] sm:$0xf]
        %v1017 = vld [vmem:[#allocation8 + $0xa0] sm:$0xf]
        %v1018 = vld [vmem:[#allocation8 + $0xa4] sm:$0xf]
        %v1019 = vld [vmem:[#allocation8 + $0xa8] sm:$0xf]
        %v1020 = vld [vmem:[#allocation8 + $0xac] sm:$0xf]
        %v1021 = vld [vmem:[#allocation8 + $0xb0] sm:$0xf]
        %v1022 = vld [vmem:[#allocation8 + $0xb4] sm:$0xf]
        %v1023 = vld [vmem:[#allocation8 + $0xb8] sm:$0xf]
        %v1024 = vld [vmem:[#allocation8 + $0xbc] sm:$0xf]
        %v1026 = vshrl.u32 %v927, 16
        %v1028 = vshll.u32 %v927, 16
        %v1030 = vrot.slane %v1028, 1
        %v1031 = vor.u32 %v1026, %v1030
        %v1033 = vrot.slane %v927, 1
        %v1034 = vunpack.c.l.b16 %v927
        %v1035 = vunpack.c.l.b16 %v1031
        %v1036 = vunpack.c.l.b16 %v1033
        %v1037 = vld [vmem:[#allocation8 + $0xc0] sm:$0xf]
        %v1038 = vld [vmem:[#allocation8 + $0xc4] sm:$0xf]
        %v1039 = vld [vmem:[#allocation8 + $0xc8] sm:$0xf]
        %v1040 = vld [vmem:[#allocation8 + $0xcc] sm:$0xf]
        %v1041 = vld [vmem:[#allocation8 + $0xd0] sm:$0xf]
        %v1042 = vld [vmem:[#allocation8 + $0xd4] sm:$0xf]
        %v1043 = vld [vmem:[#allocation8 + $0xd8] sm:$0xf]
        %v1044 = vld [vmem:[#allocation8 + $0xdc] sm:$0xf]
        %v1045 = vld [vmem:[#allocation8 + $0xe0] sm:$0xf]
        %v1046 = vld [vmem:[#allocation8 + $0xe4] sm:$0xf]
        %v1047 = vld [vmem:[#allocation8 + $0xe8] sm:$0xf]
        %v1048 = vld [vmem:[#allocation8 + $0xec] sm:$0xf]
        %v1049 = vld [vmem:[#allocation8 + $0xf0] sm:$0xf]
        %v1050 = vld [vmem:[#allocation8 + $0xf4] sm:$0xf]
        %v1051 = vld [vmem:[#allocation8 + $0xf8] sm:$0xf]
        %v1052 = vld [vmem:[#allocation8 + $0xfc] sm:$0xf]
        %v1053 = vld [vmem:[#allocation8 + $0x100] sm:$0xf]
        %v1054 = vld [vmem:[#allocation8 + $0x104] sm:$0xf]
        %v1055 = vld [vmem:[#allocation8 + $0x108] sm:$0xf]
        %v1056 = vld [vmem:[#allocation8 + $0x10c] sm:$0xf]
        %v1057 = vld [vmem:[#allocation8 + $0x110] sm:$0xf]
        %v1058 = vld [vmem:[#allocation8 + $0x114] sm:$0xf]
        %v1059 = vld [vmem:[#allocation8 + $0x118] sm:$0xf]
        %v1060 = vld [vmem:[#allocation8 + $0x11c] sm:$0xf]
        %v1061 = vld [vmem:[#allocation8 + $0x120] sm:$0xf]
        %v1062 = vld [vmem:[#allocation8 + $0x124] sm:$0xf]
        %v1063 = vld [vmem:[#allocation8 + $0x128] sm:$0xf]
        %v1064 = vld [vmem:[#allocation8 + $0x12c] sm:$0xf]
        %v1065 = vld [vmem:[#allocation8 + $0x130] sm:$0xf]
        %v1066 = vld [vmem:[#allocation8 + $0x134] sm:$0xf]
        %v1067 = vld [vmem:[#allocation8 + $0x138] sm:$0xf]
        %v1068 = vld [vmem:[#allocation8 + $0x13c] sm:$0xf]
        %v1069 = vld [vmem:[#allocation8 + $0x140] sm:$0xf]
        %v1070 = vld [vmem:[#allocation8 + $0x144] sm:$0xf]
        %v1071 = vld [vmem:[#allocation8 + $0x148] sm:$0xf]
        %v1072 = vld [vmem:[#allocation8 + $0x14c] sm:$0xf]
        %v1073 = vld [vmem:[#allocation8 + $0x150] sm:$0xf]
        %v1074 = vld [vmem:[#allocation8 + $0x154] sm:$0xf]
        %v1075 = vld [vmem:[#allocation8 + $0x158] sm:$0xf]
        %v1076 = vld [vmem:[#allocation8 + $0x15c] sm:$0xf]
        %v1077 = vld [vmem:[#allocation8 + $0x160] sm:$0xf]
        %v1078 = vld [vmem:[#allocation8 + $0x164] sm:$0xf]
        %v1079 = vld [vmem:[#allocation8 + $0x168] sm:$0xf]
        %v1080 = vld [vmem:[#allocation8 + $0x16c] sm:$0xf]
        %v1081 = vld [vmem:[#allocation8 + $0x170] sm:$0xf]
        %v1082 = vld [vmem:[#allocation8 + $0x174] sm:$0xf]
        %v1083 = vld [vmem:[#allocation8 + $0x178] sm:$0xf]
        %v1084 = vld [vmem:[#allocation8 + $0x17c] sm:$0xf]
        %v1085 = vpack.c.b16 %v971, %v968
        %v1086 = vpack.c.b16 %v972, %v969
        %v1087 = vpack.c.b16 %v973, %v970
        %v1088 = vpack.c.b16 %v1034, %v974
        %v1089 = vpack.c.b16 %v1035, %v975
        %v1090 = vpack.c.b16 %v1036, %v976
        %v1145 = vunpack.c.l.b16 %v1037
        %v1146 = vunpack.c.l.b16 %v1038
        %v1147 = vunpack.c.l.b16 %v1039
        %v1148 = vunpack.c.l.b16 %v1040
        %v1149 = vunpack.c.l.b16 %v1041
        %v1150 = vunpack.c.l.b16 %v1042
        %v1151 = vunpack.c.l.b16 %v1043
        %v1152 = vunpack.c.l.b16 %v1044
        %v1153 = vunpack.c.l.b16 %v1045
        %v1154 = vunpack.c.l.b16 %v1046
        %v1155 = vunpack.c.l.b16 %v1047
        %v1156 = vunpack.c.l.b16 %v1048
        %v1157 = vunpack.c.l.b16 %v1049
        %v1158 = vunpack.c.l.b16 %v1050
        %v1159 = vunpack.c.l.b16 %v1051
        %v1160 = vunpack.c.l.b16 %v1052
        %v1161 = vunpack.c.l.b16 %v1053
        %v1162 = vunpack.c.l.b16 %v1054
        %v1163 = vunpack.c.l.b16 %v1055
        %v1164 = vunpack.c.l.b16 %v1056
        %v1165 = vunpack.c.l.b16 %v1057
        %v1166 = vunpack.c.l.b16 %v1058
        %v1167 = vunpack.c.l.b16 %v1059
        %v1168 = vunpack.c.l.b16 %v1060
        %v1169 = vunpack.c.l.b16 %v1061
        %v1170 = vunpack.c.l.b16 %v1062
        %v1171 = vunpack.c.l.b16 %v1063
        %v1172 = vunpack.c.l.b16 %v1064
        %v1173 = vunpack.c.l.b16 %v1065
        %v1174 = vunpack.c.l.b16 %v1066
        %v1175 = vunpack.c.l.b16 %v1067
        %v1176 = vunpack.c.l.b16 %v1068
        %v1177 = vunpack.c.l.b16 %v1069
        %v1178 = vunpack.c.l.b16 %v1070
        %v1179 = vunpack.c.l.b16 %v1071
        %v1180 = vunpack.c.l.b16 %v1072
        %v1181 = vunpack.c.l.b16 %v1073
        %v1182 = vunpack.c.l.b16 %v1074
        %v1183 = vunpack.c.l.b16 %v1075
        %v1184 = vunpack.c.l.b16 %v1076
        %v1185 = vunpack.c.l.b16 %v1077
        %v1186 = vunpack.c.l.b16 %v1078
        %v1187 = vunpack.c.l.b16 %v1079
        %v1188 = vunpack.c.l.b16 %v1080
        %v1189 = vunpack.c.l.b16 %v1081
        %v1190 = vunpack.c.l.b16 %v1082
        %v1191 = vunpack.c.l.b16 %v1083
        %v1192 = vunpack.c.l.b16 %v1084
        %v1193 = vpack.c.b16 %v1146, %v1145
        %v1194 = vpack.c.b16 %v1148, %v1147
        %v1195 = vpack.c.b16 %v1150, %v1149
        %v1196 = vpack.c.b16 %v1152, %v1151
        %v1197 = vpack.c.b16 %v1154, %v1153
        %v1198 = vpack.c.b16 %v1156, %v1155
        %v1199 = vpack.c.b16 %v1158, %v1157
        %v1200 = vpack.c.b16 %v1160, %v1159
        %v1201 = vpack.c.b16 %v1162, %v1161
        %v1202 = vpack.c.b16 %v1164, %v1163
        %v1203 = vpack.c.b16 %v1166, %v1165
        %v1204 = vpack.c.b16 %v1168, %v1167
        %v1205 = vpack.c.b16 %v1170, %v1169
        %v1206 = vpack.c.b16 %v1172, %v1171
        %v1207 = vpack.c.b16 %v1174, %v1173
        %v1208 = vpack.c.b16 %v1176, %v1175
        %v1209 = vpack.c.b16 %v1178, %v1177
        %v1210 = vpack.c.b16 %v1180, %v1179
        %v1211 = vpack.c.b16 %v1182, %v1181
        %v1212 = vpack.c.b16 %v1184, %v1183
        %v1213 = vpack.c.b16 %v1186, %v1185
        %v1214 = vpack.c.b16 %v1188, %v1187
        %v1215 = vpack.c.b16 %v1190, %v1189
        %v1216 = vpack.c.b16 %v1192, %v1191
        %1241 = vmatprep.subr.bf16.mxu0 0
        %1242 = vmatpush1.bf16.msra.mxu0 %v1193
        %1243 = vmatprep.subr.bf16.mxu0 0
        %1244 = vmatpush1.bf16.msra.mxu0 %v1194
        %1245 = vmatprep.subr.bf16.mxu0 0
        %1246 = vmatpush1.bf16.msra.mxu0 %v1195
        %1247 = vmatprep.subr.bf16.mxu0 0
        %1248 = vmatpush1.bf16.msra.mxu0 %v1196
        %1249 = vmatprep.subr.bf16.mxu0 0
        %1250 = vmatpush1.bf16.msra.mxu0 %v1197
        %1251 = vmatprep.subr.bf16.mxu0 0
        %1252 = vmatpush1.bf16.msra.mxu0 %v1198
        %1253 = vmatprep.subr.bf16.mxu0 0
        %1254 = vmatpush1.bf16.msra.mxu0 %v1199
        %1255 = vmatprep.subr.bf16.mxu0 0
        %1256 = vmatpush1.bf16.msra.mxu0 %v1200
        %1257 = vmatprep.subr.bf16.mxu0 0
        %1258 = vmatpush1.bf16.msra.mxu0 %v1201
        %1259 = vmatprep.subr.bf16.mxu0 0
        %1260 = vmatpush1.bf16.msra.mxu0 %v1202
        %1261 = vmatprep.subr.bf16.mxu0 0
        %1262 = vmatpush1.bf16.msra.mxu0 %v1203
        %1263 = vmatprep.subr.bf16.mxu0 0
        %1264 = vmatpush1.bf16.msra.mxu0 %v1204
        %1265 = vmatprep.subr.bf16.mxu0 0
        %1266 = vmatpush1.bf16.msra.mxu0 %v1205
        %1267 = vmatprep.subr.bf16.mxu0 0
        %1268 = vmatpush1.bf16.msra.mxu0 %v1206
        %1269 = vmatprep.subr.bf16.mxu0 0
        %1270 = vmatpush1.bf16.msra.mxu0 %v1207
        %1271 = vmatprep.subr.bf16.mxu0 0
        %1272 = vmatpush1.bf16.msra.mxu0 %v1208
        %1273 = vmatprep.mubr.bf16.mxu0 %v1086
        %1274 = vmatmul.mubr.bf16.gmra.mrb[0].mxu0 %v1085
        %v1275 = vpop.f32.mrb[0].mxu0
        %v1276 = vadd.f32 0.0, %v1275
        %v1277 = vpop.f32.mrb[0].mxu0
        %v1278 = vpop.f32.mrb[0].mxu0
        %v1279 = vadd.f32 0.0, %v1278
        %v1280 = vpop.f32.mrb[0].mxu0
        %1281 = vmatprep.mubr.bf16.mxu0 %v1089
        %1282 = vmatmul.mubr.bf16.gmra.mrb[0].mxu0 %v1088
        %v1283 = vpop.f32.mrb[0].mxu0
        %v1284 = vadd.f32 0.0, %v1283
        %v1285 = vpop.f32.mrb[0].mxu0
        %v1286 = vpop.f32.mrb[0].mxu0
        %v1287 = vadd.f32 0.0, %v1286
        %v1288 = vpop.f32.mrb[0].mxu0
        %1289 = vdwg.mxu0
        %1290 = vmatprep.subr.bf16.mxu0 0
        %1291 = vmatpush1.bf16.msra.mxu0 %v1209
        %1292 = vmatprep.subr.bf16.mxu0 0
        %1293 = vmatpush1.bf16.msra.mxu0 %v1210
        %1294 = vmatprep.subr.bf16.mxu0 0
        %1295 = vmatpush1.bf16.msra.mxu0 %v1211
        %1296 = vmatprep.subr.bf16.mxu0 0
        %1297 = vmatpush1.bf16.msra.mxu0 %v1212
        %1298 = vmatprep.subr.bf16.mxu0 0
        %1299 = vmatpush1.bf16.msra.mxu0 %v1213
        %1300 = vmatprep.subr.bf16.mxu0 0
        %1301 = vmatpush1.bf16.msra.mxu0 %v1214
        %1302 = vmatprep.subr.bf16.mxu0 0
        %1303 = vmatpush1.bf16.msra.mxu0 %v1215
        %1304 = vmatprep.subr.bf16.mxu0 0
        %1305 = vmatpush1.bf16.msra.mxu0 %v1216
        %1306 = vmatprep.subr.bf16.mxu0 0
        %1307 = vmatpush1.bf16.msra.mxu0 0
        %1308 = vmatprep.subr.bf16.mxu0 0
        %1309 = vmatpush1.bf16.msra.mxu0 0
        %1310 = vmatprep.subr.bf16.mxu0 0
        %1311 = vmatpush1.bf16.msra.mxu0 0
        %1312 = vmatprep.subr.bf16.mxu0 0
        %1313 = vmatpush1.bf16.msra.mxu0 0
        %1314 = vmatprep.subr.bf16.mxu0 0
        %1315 = vmatpush1.bf16.msra.mxu0 0
        %1316 = vmatprep.subr.bf16.mxu0 0
        %1317 = vmatpush1.bf16.msra.mxu0 0
        %1318 = vmatprep.subr.bf16.mxu0 0
        %1319 = vmatpush1.bf16.msra.mxu0 0
        %1320 = vmatprep.subr.bf16.mxu0 0
        %1321 = vmatpush1.bf16.msra.mxu0 0
        %1322 = vmatprep.mubr.bf16.mxu0 0
        %1323 = vmatmul.mubr.bf16.gmra.mrb[0].mxu0 %v1087
        %v1324 = vpop.f32.mrb[0].mxu0
        %v1325 = vadd.f32 %v1276, %v1324
        %v1326 = vpop.f32.mrb[0].mxu0
        %v1327 = vpop.f32.mrb[0].mxu0
        %v1328 = vadd.f32 %v1279, %v1327
        %v1329 = vpop.f32.mrb[0].mxu0
        %1330 = vmatprep.mubr.bf16.mxu0 0
        %1331 = vmatmul.mubr.bf16.gmra.mrb[0].mxu0 %v1090
        %v1332 = vpop.f32.mrb[0].mxu0
        %v1333 = vadd.f32 %v1284, %v1332
        %v1334 = vpop.f32.mrb[0].mxu0
        %v1335 = vpop.f32.mrb[0].mxu0
        %v1336 = vadd.f32 %v1287, %v1335
        %v1337 = vpop.f32.mrb[0].mxu0
        %1338 = vdwg.mxu0
        %v1339 = vpack.c.b16 %v968, %v965
        %v1340 = vpack.c.b16 %v969, %v966
        %v1341 = vpack.c.b16 %v970, %v967
        %v1342 = vpack.c.b16 %v974, %v971
        %v1343 = vpack.c.b16 %v975, %v972
        %v1344 = vpack.c.b16 %v976, %v973
        %v1399 = vunpack.c.l.b16 %v977
        %v1400 = vunpack.c.l.b16 %v978
        %v1401 = vunpack.c.l.b16 %v979
        %v1402 = vunpack.c.l.b16 %v980
        %v1403 = vunpack.c.l.b16 %v981
        %v1404 = vunpack.c.l.b16 %v982
        %v1405 = vunpack.c.l.b16 %v983
        %v1406 = vunpack.c.l.b16 %v984
        %v1407 = vunpack.c.l.b16 %v985
        %v1408 = vunpack.c.l.b16 %v986
        %v1409 = vunpack.c.l.b16 %v987
        %v1410 = vunpack.c.l.b16 %v988
        %v1411 = vunpack.c.l.b16 %v989
        %v1412 = vunpack.c.l.b16 %v990
        %v1413 = vunpack.c.l.b16 %v991
        %v1414 = vunpack.c.l.b16 %v992
        %v1415 = vunpack.c.l.b16 %v993
        %v1416 = vunpack.c.l.b16 %v994
        %v1417 = vunpack.c.l.b16 %v995
        %v1418 = vunpack.c.l.b16 %v996
        %v1419 = vunpack.c.l.b16 %v997
        %v1420 = vunpack.c.l.b16 %v998
        %v1421 = vunpack.c.l.b16 %v999
        %v1422 = vunpack.c.l.b16 %v1000
        %v1423 = vunpack.c.l.b16 %v1001
        %v1424 = vunpack.c.l.b16 %v1002
        %v1425 = vunpack.c.l.b16 %v1003
        %v1426 = vunpack.c.l.b16 %v1004
        %v1427 = vunpack.c.l.b16 %v1005
        %v1428 = vunpack.c.l.b16 %v1006
        %v1429 = vunpack.c.l.b16 %v1007
        %v1430 = vunpack.c.l.b16 %v1008
        %v1431 = vunpack.c.l.b16 %v1009
        %v1432 = vunpack.c.l.b16 %v1010
        %v1433 = vunpack.c.l.b16 %v1011
        %v1434 = vunpack.c.l.b16 %v1012
        %v1435 = vunpack.c.l.b16 %v1013
        %v1436 = vunpack.c.l.b16 %v1014
        %v1437 = vunpack.c.l.b16 %v1015
        %v1438 = vunpack.c.l.b16 %v1016
        %v1439 = vunpack.c.l.b16 %v1017
        %v1440 = vunpack.c.l.b16 %v1018
        %v1441 = vunpack.c.l.b16 %v1019
        %v1442 = vunpack.c.l.b16 %v1020
        %v1443 = vunpack.c.l.b16 %v1021
        %v1444 = vunpack.c.l.b16 %v1022
        %v1445 = vunpack.c.l.b16 %v1023
        %v1446 = vunpack.c.l.b16 %v1024
        %v1447 = vpack.c.b16 %v1400, %v1399
        %v1448 = vpack.c.b16 %v1402, %v1401
        %v1449 = vpack.c.b16 %v1404, %v1403
        %v1450 = vpack.c.b16 %v1406, %v1405
        %v1451 = vpack.c.b16 %v1408, %v1407
        %v1452 = vpack.c.b16 %v1410, %v1409
        %v1453 = vpack.c.b16 %v1412, %v1411
        %v1454 = vpack.c.b16 %v1414, %v1413
        %v1455 = vpack.c.b16 %v1416, %v1415
        %v1456 = vpack.c.b16 %v1418, %v1417
        %v1457 = vpack.c.b16 %v1420, %v1419
        %v1458 = vpack.c.b16 %v1422, %v1421
        %v1459 = vpack.c.b16 %v1424, %v1423
        %v1460 = vpack.c.b16 %v1426, %v1425
        %v1461 = vpack.c.b16 %v1428, %v1427
        %v1462 = vpack.c.b16 %v1430, %v1429
        %v1463 = vpack.c.b16 %v1432, %v1431
        %v1464 = vpack.c.b16 %v1434, %v1433
        %v1465 = vpack.c.b16 %v1436, %v1435
        %v1466 = vpack.c.b16 %v1438, %v1437
        %v1467 = vpack.c.b16 %v1440, %v1439
        %v1468 = vpack.c.b16 %v1442, %v1441
        %v1469 = vpack.c.b16 %v1444, %v1443
        %v1470 = vpack.c.b16 %v1446, %v1445
        %1495 = vmatprep.subr.bf16.mxu0 0
        %1496 = vmatpush1.bf16.msra.mxu0 %v1447
        %1497 = vmatprep.subr.bf16.mxu0 0
        %1498 = vmatpush1.bf16.msra.mxu0 %v1448
        %1499 = vmatprep.subr.bf16.mxu0 0
        %1500 = vmatpush1.bf16.msra.mxu0 %v1449
        %1501 = vmatprep.subr.bf16.mxu0 0
        %1502 = vmatpush1.bf16.msra.mxu0 %v1450
        %1503 = vmatprep.subr.bf16.mxu0 0
        %1504 = vmatpush1.bf16.msra.mxu0 %v1451
        %1505 = vmatprep.subr.bf16.mxu0 0
        %1506 = vmatpush1.bf16.msra.mxu0 %v1452
        %1507 = vmatprep.subr.bf16.mxu0 0
        %1508 = vmatpush1.bf16.msra.mxu0 %v1453
        %1509 = vmatprep.subr.bf16.mxu0 0
        %1510 = vmatpush1.bf16.msra.mxu0 %v1454
        %1511 = vmatprep.subr.bf16.mxu0 0
        %1512 = vmatpush1.bf16.msra.mxu0 %v1455
        %1513 = vmatprep.subr.bf16.mxu0 0
        %1514 = vmatpush1.bf16.msra.mxu0 %v1456
        %1515 = vmatprep.subr.bf16.mxu0 0
        %1516 = vmatpush1.bf16.msra.mxu0 %v1457
        %1517 = vmatprep.subr.bf16.mxu0 0
        %1518 = vmatpush1.bf16.msra.mxu0 %v1458
        %1519 = vmatprep.subr.bf16.mxu0 0
        %1520 = vmatpush1.bf16.msra.mxu0 %v1459
        %1521 = vmatprep.subr.bf16.mxu0 0
        %1522 = vmatpush1.bf16.msra.mxu0 %v1460
        %1523 = vmatprep.subr.bf16.mxu0 0
        %1524 = vmatpush1.bf16.msra.mxu0 %v1461
        %1525 = vmatprep.subr.bf16.mxu0 0
        %1526 = vmatpush1.bf16.msra.mxu0 %v1462
        %1527 = vmatprep.mubr.bf16.mxu0 %v1340
        %1528 = vmatmul.mubr.bf16.gmra.mrb[0].mxu0 %v1339
        %v1529 = vpop.f32.mrb[0].mxu0
        %v1530 = vadd.f32 %v1325, %v1529
        %v1531 = vpop.f32.mrb[0].mxu0
        %v1532 = vpop.f32.mrb[0].mxu0
        %v1533 = vadd.f32 %v1328, %v1532
        %v1534 = vpop.f32.mrb[0].mxu0
        %1535 = vmatprep.mubr.bf16.mxu0 %v1343
        %1536 = vmatmul.mubr.bf16.gmra.mrb[0].mxu0 %v1342
        %v1537 = vpop.f32.mrb[0].mxu0
        %v1538 = vadd.f32 %v1333, %v1537
        %v1539 = vpop.f32.mrb[0].mxu0
        %v1540 = vpop.f32.mrb[0].mxu0
        %v1541 = vadd.f32 %v1336, %v1540
        %v1542 = vpop.f32.mrb[0].mxu0
        %1543 = vdwg.mxu0
        %1544 = vmatprep.subr.bf16.mxu0 0
        %1545 = vmatpush1.bf16.msra.mxu0 %v1463
        %1546 = vmatprep.subr.bf16.mxu0 0
        %1547 = vmatpush1.bf16.msra.mxu0 %v1464
        %1548 = vmatprep.subr.bf16.mxu0 0
        %1549 = vmatpush1.bf16.msra.mxu0 %v1465
        %1550 = vmatprep.subr.bf16.mxu0 0
        %1551 = vmatpush1.bf16.msra.mxu0 %v1466
        %1552 = vmatprep.subr.bf16.mxu0 0
        %1553 = vmatpush1.bf16.msra.mxu0 %v1467
        %1554 = vmatprep.subr.bf16.mxu0 0
        %1555 = vmatpush1.bf16.msra.mxu0 %v1468
        %1556 = vmatprep.subr.bf16.mxu0 0
        %1557 = vmatpush1.bf16.msra.mxu0 %v1469
        %1558 = vmatprep.subr.bf16.mxu0 0
        %1559 = vmatpush1.bf16.msra.mxu0 %v1470
        %1560 = vmatprep.subr.bf16.mxu0 0
        %1561 = vmatpush1.bf16.msra.mxu0 0
        %1562 = vmatprep.subr.bf16.mxu0 0
        %1563 = vmatpush1.bf16.msra.mxu0 0
        %1564 = vmatprep.subr.bf16.mxu0 0
        %1565 = vmatpush1.bf16.msra.mxu0 0
        %1566 = vmatprep.subr.bf16.mxu0 0
        %1567 = vmatpush1.bf16.msra.mxu0 0
        %1568 = vmatprep.subr.bf16.mxu0 0
        %1569 = vmatpush1.bf16.msra.mxu0 0
        %1570 = vmatprep.subr.bf16.mxu0 0
        %1571 = vmatpush1.bf16.msra.mxu0 0
        %1572 = vmatprep.subr.bf16.mxu0 0
        %1573 = vmatpush1.bf16.msra.mxu0 0
        %1574 = vmatprep.subr.bf16.mxu0 0
        %1575 = vmatpush1.bf16.msra.mxu0 0
        %1576 = vmatprep.mubr.bf16.mxu0 0
        %1577 = vmatmul.mubr.bf16.gmra.mrb[0].mxu0 %v1341
        %v1578 = vpop.f32.mrb[0].mxu0
        %v1579 = vadd.f32 %v1530, %v1578
        %v1580 = vpop.f32.mrb[0].mxu0
        %v1581 = vpop.f32.mrb[0].mxu0
        %v1582 = vadd.f32 %v1533, %v1581
        %v1583 = vpop.f32.mrb[0].mxu0
        %1584 = vmatprep.mubr.bf16.mxu0 0
        %1585 = vmatmul.mubr.bf16.gmra.mrb[0].mxu0 %v1344
        %v1586 = vpop.f32.mrb[0].mxu0
        %v1587 = vadd.f32 %v1538, %v1586
        %v1588 = vpop.f32.mrb[0].mxu0
        %v1589 = vpop.f32.mrb[0].mxu0
        %v1590 = vadd.f32 %v1541, %v1589
        %v1591 = vpop.f32.mrb[0].mxu0
        %1592 = vdwg.mxu0
        %v1594 = vshrl.u32 %v928, 16
        %v1596 = vshll.u32 %v928, 16
        %v1598 = vrot.slane %v1596, 1
        %v1599 = vor.u32 %v1594, %v1598
        %v1601 = vrot.slane %v928, 1
        %v1602 = vunpack.c.l.b16 %v928
        %v1603 = vunpack.c.l.b16 %v1599
        %v1604 = vunpack.c.l.b16 %v1601
        %v1605 = vld [vmem:[#allocation8 + $0x180] sm:$0xf]
        %v1606 = vld [vmem:[#allocation8 + $0x184] sm:$0xf]
        %v1607 = vld [vmem:[#allocation8 + $0x188] sm:$0xf]
        %v1608 = vld [vmem:[#allocation8 + $0x18c] sm:$0xf]
        %v1609 = vld [vmem:[#allocation8 + $0x190] sm:$0xf]
        %v1610 = vld [vmem:[#allocation8 + $0x194] sm:$0xf]
        %v1611 = vld [vmem:[#allocation8 + $0x198] sm:$0xf]
        %v1612 = vld [vmem:[#allocation8 + $0x19c] sm:$0xf]
        %v1613 = vld [vmem:[#allocation8 + $0x1a0] sm:$0xf]
        %v1614 = vld [vmem:[#allocation8 + $0x1a4] sm:$0xf]
        %v1615 = vld [vmem:[#allocation8 + $0x1a8] sm:$0xf]
        %v1616 = vld [vmem:[#allocation8 + $0x1ac] sm:$0xf]
        %v1617 = vld [vmem:[#allocation8 + $0x1b0] sm:$0xf]
        %v1618 = vld [vmem:[#allocation8 + $0x1b4] sm:$0xf]
        %v1619 = vld [vmem:[#allocation8 + $0x1b8] sm:$0xf]
        %v1620 = vld [vmem:[#allocation8 + $0x1bc] sm:$0xf]
        %v1621 = vld [vmem:[#allocation8 + $0x1c0] sm:$0xf]
        %v1622 = vld [vmem:[#allocation8 + $0x1c4] sm:$0xf]
        %v1623 = vld [vmem:[#allocation8 + $0x1c8] sm:$0xf]
        %v1624 = vld [vmem:[#allocation8 + $0x1cc] sm:$0xf]
        %v1625 = vld [vmem:[#allocation8 + $0x1d0] sm:$0xf]
        %v1626 = vld [vmem:[#allocation8 + $0x1d4] sm:$0xf]
        %v1627 = vld [vmem:[#allocation8 + $0x1d8] sm:$0xf]
        %v1628 = vld [vmem:[#allocation8 + $0x1dc] sm:$0xf]
        %v1629 = vld [vmem:[#allocation8 + $0x1e0] sm:$0xf]
        %v1630 = vld [vmem:[#allocation8 + $0x1e4] sm:$0xf]
        %v1631 = vld [vmem:[#allocation8 + $0x1e8] sm:$0xf]
        %v1632 = vld [vmem:[#allocation8 + $0x1ec] sm:$0xf]
        %v1633 = vld [vmem:[#allocation8 + $0x1f0] sm:$0xf]
        %v1634 = vld [vmem:[#allocation8 + $0x1f4] sm:$0xf]
        %v1635 = vld [vmem:[#allocation8 + $0x1f8] sm:$0xf]
        %v1636 = vld [vmem:[#allocation8 + $0x1fc] sm:$0xf]
        %v1637 = vld [vmem:[#allocation8 + $0x200] sm:$0xf]
        %v1638 = vld [vmem:[#allocation8 + $0x204] sm:$0xf]
        %v1639 = vld [vmem:[#allocation8 + $0x208] sm:$0xf]
        %v1640 = vld [vmem:[#allocation8 + $0x20c] sm:$0xf]
        %v1641 = vld [vmem:[#allocation8 + $0x210] sm:$0xf]
        %v1642 = vld [vmem:[#allocation8 + $0x214] sm:$0xf]
        %v1643 = vld [vmem:[#allocation8 + $0x218] sm:$0xf]
        %v1644 = vld [vmem:[#allocation8 + $0x21c] sm:$0xf]
        %v1645 = vld [vmem:[#allocation8 + $0x220] sm:$0xf]
        %v1646 = vld [vmem:[#allocation8 + $0x224] sm:$0xf]
        %v1647 = vld [vmem:[#allocation8 + $0x228] sm:$0xf]
        %v1648 = vld [vmem:[#allocation8 + $0x22c] sm:$0xf]
        %v1649 = vld [vmem:[#allocation8 + $0x230] sm:$0xf]
        %v1650 = vld [vmem:[#allocation8 + $0x234] sm:$0xf]
        %v1651 = vld [vmem:[#allocation8 + $0x238] sm:$0xf]
        %v1652 = vld [vmem:[#allocation8 + $0x23c] sm:$0xf]
        %v1653 = vpack.c.b16 %v1602, %v1034
        %v1654 = vpack.c.b16 %v1603, %v1035
        %v1655 = vpack.c.b16 %v1604, %v1036
        %v1707 = vunpack.c.l.b16 %v1605
        %v1708 = vunpack.c.l.b16 %v1606
        %v1709 = vunpack.c.l.b16 %v1607
        %v1710 = vunpack.c.l.b16 %v1608
        %v1711 = vunpack.c.l.b16 %v1609
        %v1712 = vunpack.c.l.b16 %v1610
        %v1713 = vunpack.c.l.b16 %v1611
        %v1714 = vunpack.c.l.b16 %v1612
        %v1715 = vunpack.c.l.b16 %v1613
        %v1716 = vunpack.c.l.b16 %v1614
        %v1717 = vunpack.c.l.b16 %v1615
        %v1718 = vunpack.c.l.b16 %v1616
        %v1719 = vunpack.c.l.b16 %v1617
        %v1720 = vunpack.c.l.b16 %v1618
        %v1721 = vunpack.c.l.b16 %v1619
        %v1722 = vunpack.c.l.b16 %v1620
        %v1723 = vunpack.c.l.b16 %v1621
        %v1724 = vunpack.c.l.b16 %v1622
        %v1725 = vunpack.c.l.b16 %v1623
        %v1726 = vunpack.c.l.b16 %v1624
        %v1727 = vunpack.c.l.b16 %v1625
        %v1728 = vunpack.c.l.b16 %v1626
        %v1729 = vunpack.c.l.b16 %v1627
        %v1730 = vunpack.c.l.b16 %v1628
        %v1731 = vunpack.c.l.b16 %v1629
        %v1732 = vunpack.c.l.b16 %v1630
        %v1733 = vunpack.c.l.b16 %v1631
        %v1734 = vunpack.c.l.b16 %v1632
        %v1735 = vunpack.c.l.b16 %v1633
        %v1736 = vunpack.c.l.b16 %v1634
        %v1737 = vunpack.c.l.b16 %v1635
        %v1738 = vunpack.c.l.b16 %v1636
        %v1739 = vunpack.c.l.b16 %v1637
        %v1740 = vunpack.c.l.b16 %v1638
        %v1741 = vunpack.c.l.b16 %v1639
        %v1742 = vunpack.c.l.b16 %v1640
        %v1743 = vunpack.c.l.b16 %v1641
        %v1744 = vunpack.c.l.b16 %v1642
        %v1745 = vunpack.c.l.b16 %v1643
        %v1746 = vunpack.c.l.b16 %v1644
        %v1747 = vunpack.c.l.b16 %v1645
        %v1748 = vunpack.c.l.b16 %v1646
        %v1749 = vunpack.c.l.b16 %v1647
        %v1750 = vunpack.c.l.b16 %v1648
        %v1751 = vunpack.c.l.b16 %v1649
        %v1752 = vunpack.c.l.b16 %v1650
        %v1753 = vunpack.c.l.b16 %v1651
        %v1754 = vunpack.c.l.b16 %v1652
        %v1755 = vpack.c.b16 %v1708, %v1707
        %v1756 = vpack.c.b16 %v1710, %v1709
        %v1757 = vpack.c.b16 %v1712, %v1711
        %v1758 = vpack.c.b16 %v1714, %v1713
        %v1759 = vpack.c.b16 %v1716, %v1715
        %v1760 = vpack.c.b16 %v1718, %v1717
        %v1761 = vpack.c.b16 %v1720, %v1719
        %v1762 = vpack.c.b16 %v1722, %v1721
        %v1763 = vpack.c.b16 %v1724, %v1723
        %v1764 = vpack.c.b16 %v1726, %v1725
        %v1765 = vpack.c.b16 %v1728, %v1727
        %v1766 = vpack.c.b16 %v1730, %v1729
        %v1767 = vpack.c.b16 %v1732, %v1731
        %v1768 = vpack.c.b16 %v1734, %v1733
        %v1769 = vpack.c.b16 %v1736, %v1735
        %v1770 = vpack.c.b16 %v1738, %v1737
        %v1771 = vpack.c.b16 %v1740, %v1739
        %v1772 = vpack.c.b16 %v1742, %v1741
        %v1773 = vpack.c.b16 %v1744, %v1743
        %v1774 = vpack.c.b16 %v1746, %v1745
        %v1775 = vpack.c.b16 %v1748, %v1747
        %v1776 = vpack.c.b16 %v1750, %v1749
        %v1777 = vpack.c.b16 %v1752, %v1751
        %v1778 = vpack.c.b16 %v1754, %v1753
        %1803 = vmatprep.subr.bf16.mxu0 0
        %1804 = vmatpush1.bf16.msra.mxu0 %v1755
        %1805 = vmatprep.subr.bf16.mxu0 0
        %1806 = vmatpush1.bf16.msra.mxu0 %v1756
        %1807 = vmatprep.subr.bf16.mxu0 0
        %1808 = vmatpush1.bf16.msra.mxu0 %v1757
        %1809 = vmatprep.subr.bf16.mxu0 0
        %1810 = vmatpush1.bf16.msra.mxu0 %v1758
        %1811 = vmatprep.subr.bf16.mxu0 0
        %1812 = vmatpush1.bf16.msra.mxu0 %v1759
        %1813 = vmatprep.subr.bf16.mxu0 0
        %1814 = vmatpush1.bf16.msra.mxu0 %v1760
        %1815 = vmatprep.subr.bf16.mxu0 0
        %1816 = vmatpush1.bf16.msra.mxu0 %v1761
        %1817 = vmatprep.subr.bf16.mxu0 0
        %1818 = vmatpush1.bf16.msra.mxu0 %v1762
        %1819 = vmatprep.subr.bf16.mxu0 0
        %1820 = vmatpush1.bf16.msra.mxu0 %v1763
        %1821 = vmatprep.subr.bf16.mxu0 0
        %1822 = vmatpush1.bf16.msra.mxu0 %v1764
        %1823 = vmatprep.subr.bf16.mxu0 0
        %1824 = vmatpush1.bf16.msra.mxu0 %v1765
        %1825 = vmatprep.subr.bf16.mxu0 0
        %1826 = vmatpush1.bf16.msra.mxu0 %v1766
        %1827 = vmatprep.subr.bf16.mxu0 0
        %1828 = vmatpush1.bf16.msra.mxu0 %v1767
        %1829 = vmatprep.subr.bf16.mxu0 0
        %1830 = vmatpush1.bf16.msra.mxu0 %v1768
        %1831 = vmatprep.subr.bf16.mxu0 0
        %1832 = vmatpush1.bf16.msra.mxu0 %v1769
        %1833 = vmatprep.subr.bf16.mxu0 0
        %1834 = vmatpush1.bf16.msra.mxu0 %v1770
        %1835 = vmatprep.mubr.bf16.mxu0 %v1343
        %1836 = vmatmul.mubr.bf16.gmra.mrb[0].mxu0 %v1342
        %v1837 = vpop.f32.mrb[0].mxu0
        %v1838 = vadd.f32 0.0, %v1837
        %v1839 = vpop.f32.mrb[0].mxu0
        %v1840 = vpop.f32.mrb[0].mxu0
        %v1841 = vadd.f32 0.0, %v1840
        %v1842 = vpop.f32.mrb[0].mxu0
        %1843 = vmatprep.mubr.bf16.mxu0 %v1654
        %1844 = vmatmul.mubr.bf16.gmra.mrb[0].mxu0 %v1653
        %v1845 = vpop.f32.mrb[0].mxu0
        %v1846 = vadd.f32 0.0, %v1845
        %v1847 = vpop.f32.mrb[0].mxu0
        %v1848 = vpop.f32.mrb[0].mxu0
        %v1849 = vadd.f32 0.0, %v1848
        %v1850 = vpop.f32.mrb[0].mxu0
        %1851 = vdwg.mxu0
        %1852 = vmatprep.subr.bf16.mxu0 0
        %1853 = vmatpush1.bf16.msra.mxu0 %v1771
        %1854 = vmatprep.subr.bf16.mxu0 0
        %1855 = vmatpush1.bf16.msra.mxu0 %v1772
        %1856 = vmatprep.subr.bf16.mxu0 0
        %1857 = vmatpush1.bf16.msra.mxu0 %v1773
        %1858 = vmatprep.subr.bf16.mxu0 0
        %1859 = vmatpush1.bf16.msra.mxu0 %v1774
        %1860 = vmatprep.subr.bf16.mxu0 0
        %1861 = vmatpush1.bf16.msra.mxu0 %v1775
        %1862 = vmatprep.subr.bf16.mxu0 0
        %1863 = vmatpush1.bf16.msra.mxu0 %v1776
        %1864 = vmatprep.subr.bf16.mxu0 0
        %1865 = vmatpush1.bf16.msra.mxu0 %v1777
        %1866 = vmatprep.subr.bf16.mxu0 0
        %1867 = vmatpush1.bf16.msra.mxu0 %v1778
        %1868 = vmatprep.subr.bf16.mxu0 0
        %1869 = vmatpush1.bf16.msra.mxu0 0
        %1870 = vmatprep.subr.bf16.mxu0 0
        %1871 = vmatpush1.bf16.msra.mxu0 0
        %1872 = vmatprep.subr.bf16.mxu0 0
        %1873 = vmatpush1.bf16.msra.mxu0 0
        %1874 = vmatprep.subr.bf16.mxu0 0
        %1875 = vmatpush1.bf16.msra.mxu0 0
        %1876 = vmatprep.subr.bf16.mxu0 0
        %1877 = vmatpush1.bf16.msra.mxu0 0
        %1878 = vmatprep.subr.bf16.mxu0 0
        %1879 = vmatpush1.bf16.msra.mxu0 0
        %1880 = vmatprep.subr.bf16.mxu0 0
        %1881 = vmatpush1.bf16.msra.mxu0 0
        %1882 = vmatprep.subr.bf16.mxu0 0
        %1883 = vmatpush1.bf16.msra.mxu0 0
        %1884 = vmatprep.mubr.bf16.mxu0 0
        %1885 = vmatmul.mubr.bf16.gmra.mrb[0].mxu0 %v1344
        %v1886 = vpop.f32.mrb[0].mxu0
        %v1887 = vadd.f32 %v1838, %v1886
        %v1888 = vpop.f32.mrb[0].mxu0
        %v1889 = vpop.f32.mrb[0].mxu0
        %v1890 = vadd.f32 %v1841, %v1889
        %v1891 = vpop.f32.mrb[0].mxu0
        %1892 = vmatprep.mubr.bf16.mxu0 0
        %1893 = vmatmul.mubr.bf16.gmra.mrb[0].mxu0 %v1655
        %v1894 = vpop.f32.mrb[0].mxu0
        %v1895 = vadd.f32 %v1846, %v1894
        %v1896 = vpop.f32.mrb[0].mxu0
        %v1897 = vpop.f32.mrb[0].mxu0
        %v1898 = vadd.f32 %v1849, %v1897
        %v1899 = vpop.f32.mrb[0].mxu0
        %1900 = vdwg.mxu0
        %v1901 = vadd.f32 %v1579, %v1887
        %v1902 = vadd.f32 %v1582, %v1890
        %v1903 = vadd.f32 %v1587, %v1895
        %v1904 = vadd.f32 %v1590, %v1898
        %v1905 = vld [vmem:[%s8] sm:$0x1]
        %v1907 = vlaneseq
        %v1908 = vshrl.u32 %v1907, 7
        %v1909 = vsub.s32 0, %v1908
        %v1910 = vrot.slane %v1905, %v1909
        %v1912 = vmul.f32 %v1901, %v1910
        %v1913 = vmul.f32 %v1902, %v1910
        %v1914 = vmul.f32 %v1903, %v1910
        %v1915 = vmul.f32 %v1904, %v1910
        %v1916 = vld [vmem:[%s9] sm:$0x1]
        %v1918 = vlaneseq
        %v1919 = vshrl.u32 %v1918, 7
        %v1920 = vsub.s32 0, %v1919
        %v1921 = vrot.slane %v1916, %v1920
        %v1923 = vadd.f32 %v1912, %v1921
        %v1924 = vadd.f32 %v1913, %v1921
        %v1925 = vadd.f32 %v1914, %v1921
        %v1926 = vadd.f32 %v1915, %v1921
        %v1927 = vmax.f32 %v1923, 0.0
        %v1928 = vmax.f32 %v1924, 0.0
        %v1929 = vmax.f32 %v1925, 0.0
        %v1930 = vmax.f32 %v1926, 0.0
        %v1931 = vpack.c.bf16 %v1928, %v1927
        %v1932 = vpack.c.bf16 %v1930, %v1929
        %v1933 = vld [vmem:[#allocation10] sm:$0xf]
        %v1934 = vld [vmem:[#allocation10 + $0x4] sm:$0xf]
        %v1935 = vld [vmem:[#allocation10 + $0x8] sm:$0xf]
        %v1936 = vld [vmem:[#allocation10 + $0xc] sm:$0xf]
        %v1937 = vld [vmem:[#allocation10 + $0x10] sm:$0xf]
        %v1938 = vld [vmem:[#allocation10 + $0x14] sm:$0xf]
        %v1939 = vld [vmem:[#allocation10 + $0x18] sm:$0xf]
        %v1940 = vld [vmem:[#allocation10 + $0x1c] sm:$0xf]
        %v1941 = vld [vmem:[#allocation10 + $0x20] sm:$0xf]
        %v1942 = vld [vmem:[#allocation10 + $0x24] sm:$0xf]
        %v1943 = vld [vmem:[#allocation10 + $0x28] sm:$0xf]
        %v1944 = vld [vmem:[#allocation10 + $0x2c] sm:$0xf]
        %v1945 = vld [vmem:[#allocation10 + $0x30] sm:$0xf]
        %v1946 = vld [vmem:[#allocation10 + $0x34] sm:$0xf]
        %v1947 = vld [vmem:[#allocation10 + $0x38] sm:$0xf]
        %v1948 = vld [vmem:[#allocation10 + $0x3c] sm:$0xf]
        %v1949 = vld [vmem:[#allocation11] sm:$0xf]
        %v1950 = vld [vmem:[#allocation11 + $0x4] sm:$0xf]
        %v1951 = vld [vmem:[#allocation11 + $0x8] sm:$0xf]
        %v1952 = vld [vmem:[#allocation11 + $0xc] sm:$0xf]
        %v1953 = vld [vmem:[#allocation11 + $0x10] sm:$0xf]
        %v1954 = vld [vmem:[#allocation11 + $0x14] sm:$0xf]
        %v1955 = vld [vmem:[#allocation11 + $0x18] sm:$0xf]
        %v1956 = vld [vmem:[#allocation11 + $0x1c] sm:$0xf]
        %v1957 = vld [vmem:[#allocation11 + $0x20] sm:$0xf]
        %v1958 = vld [vmem:[#allocation11 + $0x24] sm:$0xf]
        %v1959 = vld [vmem:[#allocation11 + $0x28] sm:$0xf]
        %v1960 = vld [vmem:[#allocation11 + $0x2c] sm:$0xf]
        %v1961 = vld [vmem:[#allocation11 + $0x30] sm:$0xf]
        %v1962 = vld [vmem:[#allocation11 + $0x34] sm:$0xf]
        %v1963 = vld [vmem:[#allocation11 + $0x38] sm:$0xf]
        %v1964 = vld [vmem:[#allocation11 + $0x3c] sm:$0xf]
        %v1965 = vpack.c.b16 %v630, %v629
        %v1966 = vpack.c.b16 %v632, %v631
        %v1985 = vunpack.c.l.b16 %v1949
        %v1986 = vunpack.c.l.b16 %v1950
        %v1987 = vunpack.c.l.b16 %v1951
        %v1988 = vunpack.c.l.b16 %v1952
        %v1989 = vunpack.c.l.b16 %v1953
        %v1990 = vunpack.c.l.b16 %v1954
        %v1991 = vunpack.c.l.b16 %v1955
        %v1992 = vunpack.c.l.b16 %v1956
        %v1993 = vunpack.c.l.b16 %v1957
        %v1994 = vunpack.c.l.b16 %v1958
        %v1995 = vunpack.c.l.b16 %v1959
        %v1996 = vunpack.c.l.b16 %v1960
        %v1997 = vunpack.c.l.b16 %v1961
        %v1998 = vunpack.c.l.b16 %v1962
        %v1999 = vunpack.c.l.b16 %v1963
        %v2000 = vunpack.c.l.b16 %v1964
        %v2001 = vpack.c.b16 %v1986, %v1985
        %v2002 = vpack.c.b16 %v1988, %v1987
        %v2003 = vpack.c.b16 %v1990, %v1989
        %v2004 = vpack.c.b16 %v1992, %v1991
        %v2005 = vpack.c.b16 %v1994, %v1993
        %v2006 = vpack.c.b16 %v1996, %v1995
        %v2007 = vpack.c.b16 %v1998, %v1997
        %v2008 = vpack.c.b16 %v2000, %v1999
        %2017 = vmatprep.subr.bf16.mxu0 0
        %2018 = vmatpush1.bf16.msra.mxu0 %v2001
        %2019 = vmatprep.subr.bf16.mxu0 0
        %2020 = vmatpush1.bf16.msra.mxu0 %v2002
        %2021 = vmatprep.subr.bf16.mxu0 0
        %2022 = vmatpush1.bf16.msra.mxu0 %v2003
        %2023 = vmatprep.subr.bf16.mxu0 0
        %2024 = vmatpush1.bf16.msra.mxu0 %v2004
        %2025 = vmatprep.subr.bf16.mxu0 0
        %2026 = vmatpush1.bf16.msra.mxu0 %v2005
        %2027 = vmatprep.subr.bf16.mxu0 0
        %2028 = vmatpush1.bf16.msra.mxu0 %v2006
        %2029 = vmatprep.subr.bf16.mxu0 0
        %2030 = vmatpush1.bf16.msra.mxu0 %v2007
        %2031 = vmatprep.subr.bf16.mxu0 0
        %2032 = vmatpush1.bf16.msra.mxu0 %v2008
        %2033 = vmatprep.subr.bf16.mxu0 0
        %2034 = vmatpush1.bf16.msra.mxu0 0
        %2035 = vmatprep.subr.bf16.mxu0 0
        %2036 = vmatpush1.bf16.msra.mxu0 0
        %2037 = vmatprep.subr.bf16.mxu0 0
        %2038 = vmatpush1.bf16.msra.mxu0 0
        %2039 = vmatprep.subr.bf16.mxu0 0
        %2040 = vmatpush1.bf16.msra.mxu0 0
        %2041 = vmatprep.subr.bf16.mxu0 0
        %2042 = vmatpush1.bf16.msra.mxu0 0
        %2043 = vmatprep.subr.bf16.mxu0 0
        %2044 = vmatpush1.bf16.msra.mxu0 0
        %2045 = vmatprep.subr.bf16.mxu0 0
        %2046 = vmatpush1.bf16.msra.mxu0 0
        %2047 = vmatprep.subr.bf16.mxu0 0
        %2048 = vmatpush1.bf16.msra.mxu0 0
        %2049 = vmatprep.mubr.bf16.mxu0 0
        %2050 = vmatmul.mubr.bf16.gmra.mrb[0].mxu0 %v1965
        %v2051 = vpop.f32.mrb[0].mxu0
        %v2052 = vadd.f32 0.0, %v2051
        %v2053 = vpop.f32.mrb[0].mxu0
        %v2054 = vpop.f32.mrb[0].mxu0
        %v2055 = vadd.f32 0.0, %v2054
        %v2056 = vpop.f32.mrb[0].mxu0
        %2057 = vmatprep.mubr.bf16.mxu0 0
        %2058 = vmatmul.mubr.bf16.gmra.mrb[0].mxu0 %v1966
        %v2059 = vpop.f32.mrb[0].mxu0
        %v2060 = vadd.f32 0.0, %v2059
        %v2061 = vpop.f32.mrb[0].mxu0
        %v2062 = vpop.f32.mrb[0].mxu0
        %v2063 = vadd.f32 0.0, %v2062
        %v2064 = vpop.f32.mrb[0].mxu0
        %2065 = vdwg.mxu0
        %v2082 = vunpack.c.l.b16 %v1933
        %v2083 = vunpack.c.l.b16 %v1934
        %v2084 = vunpack.c.l.b16 %v1935
        %v2085 = vunpack.c.l.b16 %v1936
        %v2086 = vunpack.c.l.b16 %v1937
        %v2087 = vunpack.c.l.b16 %v1938
        %v2088 = vunpack.c.l.b16 %v1939
        %v2089 = vunpack.c.l.b16 %v1940
        %v2090 = vunpack.c.l.b16 %v1941
        %v2091 = vunpack.c.l.b16 %v1942
        %v2092 = vunpack.c.l.b16 %v1943
        %v2093 = vunpack.c.l.b16 %v1944
        %v2094 = vunpack.c.l.b16 %v1945
        %v2095 = vunpack.c.l.b16 %v1946
        %v2096 = vunpack.c.l.b16 %v1947
        %v2097 = vunpack.c.l.b16 %v1948
        %v2098 = vpack.c.b16 %v2083, %v2082
        %v2099 = vpack.c.b16 %v2085, %v2084
        %v2100 = vpack.c.b16 %v2087, %v2086
        %v2101 = vpack.c.b16 %v2089, %v2088
        %v2102 = vpack.c.b16 %v2091, %v2090
        %v2103 = vpack.c.b16 %v2093, %v2092
        %v2104 = vpack.c.b16 %v2095, %v2094
        %v2105 = vpack.c.b16 %v2097, %v2096
        %2114 = vmatprep.subr.bf16.mxu0 0
        %2115 = vmatpush1.bf16.msra.mxu0 %v2098
        %2116 = vmatprep.subr.bf16.mxu0 0
        %2117 = vmatpush1.bf16.msra.mxu0 %v2099
        %2118 = vmatprep.subr.bf16.mxu0 0
        %2119 = vmatpush1.bf16.msra.mxu0 %v2100
        %2120 = vmatprep.subr.bf16.mxu0 0
        %2121 = vmatpush1.bf16.msra.mxu0 %v2101
        %2122 = vmatprep.subr.bf16.mxu0 0
        %2123 = vmatpush1.bf16.msra.mxu0 %v2102
        %2124 = vmatprep.subr.bf16.mxu0 0
        %2125 = vmatpush1.bf16.msra.mxu0 %v2103
        %2126 = vmatprep.subr.bf16.mxu0 0
        %2127 = vmatpush1.bf16.msra.mxu0 %v2104
        %2128 = vmatprep.subr.bf16.mxu0 0
        %2129 = vmatpush1.bf16.msra.mxu0 %v2105
        %2130 = vmatprep.subr.bf16.mxu0 0
        %2131 = vmatpush1.bf16.msra.mxu0 0
        %2132 = vmatprep.subr.bf16.mxu0 0
        %2133 = vmatpush1.bf16.msra.mxu0 0
        %2134 = vmatprep.subr.bf16.mxu0 0
        %2135 = vmatpush1.bf16.msra.mxu0 0
        %2136 = vmatprep.subr.bf16.mxu0 0
        %2137 = vmatpush1.bf16.msra.mxu0 0
        %2138 = vmatprep.subr.bf16.mxu0 0
        %2139 = vmatpush1.bf16.msra.mxu0 0
        %2140 = vmatprep.subr.bf16.mxu0 0
        %2141 = vmatpush1.bf16.msra.mxu0 0
        %2142 = vmatprep.subr.bf16.mxu0 0
        %2143 = vmatpush1.bf16.msra.mxu0 0
        %2144 = vmatprep.subr.bf16.mxu0 0
        %2145 = vmatpush1.bf16.msra.mxu0 0
        %2146 = vmatprep.mubr.bf16.mxu0 0
        %2147 = vmatmul.mubr.bf16.gmra.mrb[0].mxu0 %v1931
        %v2148 = vpop.f32.mrb[0].mxu0
        %v2149 = vadd.f32 %v2052, %v2148
        %v2150 = vpop.f32.mrb[0].mxu0
        %v2151 = vpop.f32.mrb[0].mxu0
        %v2152 = vadd.f32 %v2055, %v2151
        %v2153 = vpop.f32.mrb[0].mxu0
        %2154 = vmatprep.mubr.bf16.mxu0 0
        %2155 = vmatmul.mubr.bf16.gmra.mrb[0].mxu0 %v1932
        %v2156 = vpop.f32.mrb[0].mxu0
        %v2157 = vadd.f32 %v2060, %v2156
        %v2158 = vpop.f32.mrb[0].mxu0
        %v2159 = vpop.f32.mrb[0].mxu0
        %v2160 = vadd.f32 %v2063, %v2159
        %v2161 = vpop.f32.mrb[0].mxu0
        %2162 = vdwg.mxu0
        %v2163 = vpack.c.bf16 %v2149, %v2149
        %v2164 = vpack.c.bf16 %v2152, %v2152
        %v2165 = vpack.c.bf16 %v2157, %v2157
        %v2166 = vpack.c.bf16 %v2160, %v2160
        %2167 = vst [vmem:[%s551] sm:$0xf] %v2163
        %2168 = vst [vmem:[%s551 + $0x4] sm:$0xf] %v2164
        %2169 = vst [vmem:[%s551 + $0x8] sm:$0xf] %v2165
        %2170 = vst [vmem:[%s551 + $0xc] sm:$0xf] %v2166
        %s2171 = sand.u32 %s322, 1
        %s2172 = scalar_lea.sflag [#allocation4], %s2171
        %s2173 = sand.u32 %s322, 1
        %s2174 = smul.addr %s2173, 16
        %s2175 = scalar_lea.vmem [#allocation13], %s2174
        // Predicated region
        $region93: #{tpu_custom_call.1} parent=67 // pred_check
          %p2176 = pneg %p332
        $region94: #{tpu_custom_call.1} parent=67 // pred_check_branch
          %2178 = sbr.rel (%p2176) target = $region96
        $region95: #{tpu_custom_call.1} parent=67 // pred_region
          %s2179 = smul.u32 4, %s39
          %s2181 = ssub.s32 256, 256
          %2182 = vsyncadd %s2172, %s2181
          %s2183 = smul.addr %s38, 8
          %s2184 = sadd.s32 %s2179, %s2183
          %s2185 = smul.addr %s2184, 64
          %s2186 = scalar_lea.hbm %s12, %s2185
          %s2187 = sshll.u32 %s2175, 4
          %s2188 = int_to_ptr.vmem [resolvable:$true] %s2187
          %2193 = dma.vmem_to_hbm [thread:$0]  %s2188, 256, %s2186, %s2172, 64, 64, 4
        $region96: #{tpu_custom_call.1} parent=67 // pred_fallthru
          _
      $region68: #{tpu_custom_call.1} parent=5 // pred_fallthru
        _
      %p2194 = scmp.le.s32.totalorder 2, %s29
      // Predicated region
      $region97: #{tpu_custom_call.1} parent=5 // pred_check
        %p2195 = pneg %p2194
      $region98: #{tpu_custom_call.1} parent=5 // pred_check_branch
        %2197 = sbr.rel (%p2195) target = $region100
      $region99: #{tpu_custom_call.1} parent=5 // pred_region
        %s2198 = ssub.s32 %s29, 2
        // Predicated region
        $region101: #{tpu_custom_call.1} parent=99 // pred_check
          %p2199 = pneg %p338
        $region102: #{tpu_custom_call.1} parent=99 // pred_check_branch
          %2201 = sbr.rel (%p2199) target = $region104
        $region103: #{tpu_custom_call.1} parent=99 // pred_region
          %s2202 = sand.u32 %s323, 1
          %s2203 = scalar_lea.sflag [#allocation4], %s2202
          %s2204 = sand.u32 %s323, 1
          %s2205 = smul.addr %s2204, 16
          %s2206 = scalar_lea.vmem [#allocation13], %s2205
          %2207 = dma.done %s2203, 256
        $region104: #{tpu_custom_call.1} parent=99 // pred_fallthru
          _
      $region100: #{tpu_custom_call.1} parent=5 // pred_fallthru
        _
    $region6: #{tpu_custom_call.1} parent=1 // loop_footer
      %s33 = sadd.s32 1, %s29
    $region7: #{tpu_custom_call.1} parent=1 // loop_footer_branch
      %28 = sbr.rel target = $region3
    $region8: #{tpu_custom_call.1} parent=1 // loop_exit
      _
    %2208 = vsyncpa [#allocation3], 1
    %s2209 = scalar_lea.sflag [#allocation3], 1
    %2210 = vsyncpa %s2209, 1
    %2211 = vsyncpa [#allocation6], 1
    %s2212 = scalar_lea.sflag [#allocation6], 1
    %2213 = vsyncpa %s2212, 1
    %2214 = vsyncpa [#allocation9], 1
    %2215 = vsyncpa [#allocation12], 1
    %2216 = vsyncpa [#allocation4], 1
    %s2217 = scalar_lea.sflag [#allocation4], 1
    %2218 = vsyncpa %s2217, 1

</llo_original>
